<compile_context>
chip_gen: v6e
topology: v6e:2x2x1
jax: 0.10.0
libtpu: 0.0.40
codegen_flags: <defaults>
</compile_context>

<pallas_src>
import functools

import numpy as np
import jax
import jax.numpy as jnp
from jax.experimental import pallas as pl
from jax.experimental.pallas import tpu as pltpu

EPS = 1e-5  # matches both the custom LayerNorm and torch.nn.LayerNorm defaults
_INV_SQRT2 = np.float32(1.0 / np.sqrt(2.0))
_NEG_BIG = np.float32(-1e30)


def _layer_norm(x, w, b):
    """(x - mean) * rsqrt(var + eps) * w + b  (population variance, last dim)."""
    mean = jnp.mean(x, axis=-1, keepdims=True)
    var = jnp.mean((x - mean) ** 2, axis=-1, keepdims=True)
    return (x - mean) * jax.lax.rsqrt(var + EPS) * w + b


def _gelu_exact(x):
    # torch.nn.GELU() default (approximate='none'): 0.5*x*(1+erf(x/sqrt(2)))
    return 0.5 * x * (1.0 + jax.lax.erf(x * _INV_SQRT2))


# ---------------------------------------------------------------------------
# Pallas kernel: all layers + head LayerNorm, grid = (num_layers,)
# ---------------------------------------------------------------------------
def transformer_kernel(x_ref, wqkv_ref, bqkv_ref, wo_ref, small_ref,
                       w1_ref, b1_ref, w2_ref, head_ln_ref,
                       o_ref, carry_ref, *,
                       batch, seq, seq_valid, num_heads, head_size):
    l = pl.program_id(0)
    num_layers = pl.num_programs(0)
    B, S = batch, seq
    D = num_heads * head_size
    bf = jnp.bfloat16

    # Load the embedded (padded, flattened) input into the VMEM carry once.
    @pl.when(l == 0)
    def _():
        carry_ref[...] = x_ref[...]

    x = carry_ref[...]                                      # (B*S, D) f32

    # packed small per-layer params: [ln1w, ln1b, ln2w, ln2b, bo, b2]
    ln1w = small_ref[0, 0]
    ln1b = small_ref[0, 1]
    ln2w = small_ref[0, 2]
    ln2b = small_ref[0, 3]
    bo = small_ref[0, 4]
    b2 = small_ref[0, 5]

    # ---- pre-norm 1 + fused QKV projection (M = B*S rows into the MXU) -----
    xn = _layer_norm(x, ln1w, ln1b)
    qkv = jnp.dot(xn.astype(bf), wqkv_ref[0],
                  preferred_element_type=jnp.float32) + bqkv_ref[0, 0]  # (B*S, 3D)
    q, k, v = qkv[:, :D], qkv[:, D:2 * D], qkv[:, 2 * D:]

    # ---- multi-headed self attention, batched over (batch, head) -----------
    if num_heads == 1:
        q3 = q.reshape(B, S, D)
        k3 = k.reshape(B, S, D)
        v3 = v.reshape(B, S, D)
    else:
        # TODO(synk): only traced for num_heads > 1; pre-split weights in HBM
        # at real scale to avoid this in-kernel lane relayout.
        def split(t):
            return (t.reshape(B, S, num_heads, head_size)
                     .transpose(0, 2, 1, 3)
                     .reshape(B * num_heads, S, head_size))
        q3, k3, v3 = split(q), split(k), split(v)

    scale = np.float32(1.0 / np.sqrt(head_size))
    scores = jax.lax.dot_general(
        q3.astype(bf), k3.astype(bf),
        (((2,), (2,)), ((0,), (0,))),
        preferred_element_type=jnp.float32) * scale         # (B*H, S, S)
    if seq_valid < S:
        # mask padded key columns (static compile-time condition)
        col = jax.lax.broadcasted_iota(jnp.int32, scores.shape, 2)
        scores = jnp.where(col < seq_valid, scores, _NEG_BIG)
    scores = scores - jnp.max(scores, axis=-1, keepdims=True)
    p = jnp.exp(scores)
    p = p * pl.reciprocal(jnp.sum(p, axis=-1, keepdims=True), approx=True)
    pv = jax.lax.dot_general(
        p.astype(bf), v3.astype(bf),
        (((2,), (1,)), ((0,), (0,))),
        preferred_element_type=jnp.float32)                 # (B*H, S, hd)
    if num_heads == 1:
        y = pv.reshape(B * S, D)
    else:
        y = (pv.reshape(B, num_heads, S, head_size)
               .transpose(0, 2, 1, 3)
               .reshape(B * S, D))

    attn_out = jnp.dot(y.astype(bf), wo_ref[0],
                       preferred_element_type=jnp.float32) + bo
    res = x + attn_out                                      # residual

    # ---- pre-norm 2 + FFN (Linear -> GELU(exact) -> Linear), dropout = id ---
    rn = _layer_norm(res, ln2w, ln2b)
    h1 = jnp.dot(rn.astype(bf), w1_ref[0],
                 preferred_element_type=jnp.float32) + b1_ref[0, 0]
    g = _gelu_exact(h1)
    h2 = jnp.dot(g.astype(bf), w2_ref[0],
                 preferred_element_type=jnp.float32) + b2
    new_x = h2 + res

    carry_ref[...] = new_x                                  # carry to next layer

    # fused mlp_head LayerNorm on the CLS rows only; single (B, D) HBM write.
    @pl.when(l == num_layers - 1)
    def _():
        cls = new_x.reshape(B, S, D)[:, 0, :]               # (B, D)
        o_ref[...] = _layer_norm(cls, head_ln_ref[0],
                                 head_ln_ref[1]).astype(o_ref.dtype)


# ---------------------------------------------------------------------------
# Wrapper
# ---------------------------------------------------------------------------
def run_transformer_layers(x, params, num_heads):
    """All layers + head LayerNorm in a single pallas_call (grid = (L,))."""
    B, S_valid, D = x.shape
    layers = params["layers"]
    L = len(layers)
    head_size = D // num_heads
    bf = jnp.bfloat16

    # Pad the sequence to a multiple of 8 (sublane alignment); padded key
    # columns are masked inside the kernel, padded rows are never read out.
    S = ((S_valid + 7) // 8) * 8
    if S > S_valid:
        x = jnp.pad(x, ((0, 0), (0, S - S_valid), (0, 0)))
    x_flat = x.reshape(B * S, D)

    # Fused QKV weight / bias; weights stored bf16 (halves DMA, native MXU type).
    wqkv = jnp.stack([jnp.concatenate([p["wq"], p["wk"], p["wv"]], axis=1)
                      for p in layers]).astype(bf)                   # (L, D, 3D)
    bqkv = jnp.stack([jnp.concatenate([p["bq"], p["bk"], p["bv"]], axis=1)
                      for p in layers])                              # (L, 1, 3D)
    wo = jnp.stack([p["wo"] for p in layers]).astype(bf)             # (L, D, D)
    # Packed small D-wide per-layer params: [ln1w, ln1b, ln2w, ln2b, bo, b2]
    smalls = jnp.stack([jnp.concatenate(
        [p["ln1w"], p["ln1b"], p["ln2w"], p["ln2b"], p["bo"], p["b2"]], axis=0)
        for p in layers])                                            # (L, 6, D)
    w1 = jnp.stack([p["w1"] for p in layers]).astype(bf)             # (L, D, H)
    b1 = jnp.stack([p["b1"] for p in layers])                        # (L, 1, H)
    w2 = jnp.stack([p["w2"] for p in layers]).astype(bf)             # (L, H, D)
    head_ln = jnp.concatenate([params["head_ln_w"],
                               params["head_ln_b"]], axis=0)         # (2, D)

    kernel = functools.partial(transformer_kernel,
                               batch=B, seq=S, seq_valid=S_valid,
                               num_heads=num_heads, head_size=head_size)

    def layer_spec(w):
        # per-layer block, indexed by the (only) layer grid coordinate
        return pl.BlockSpec((1,) + w.shape[1:], lambda l: (l, 0, 0))

    const2d = lambda shape: pl.BlockSpec(shape, lambda l: (0, 0))

    return pl.pallas_call(
        kernel,
        out_shape=jax.ShapeDtypeStruct((B, D), jnp.float32),
        grid=(L,),
        in_specs=[const2d((B * S, D)),          # x (resident across layers)
                  layer_spec(wqkv), layer_spec(bqkv),
                  layer_spec(wo), layer_spec(smalls),
                  layer_spec(w1), layer_spec(b1), layer_spec(w2),
                  const2d((2, D))],             # head LayerNorm params
        out_specs=const2d((B, D)),
        scratch_shapes=[pltpu.VMEM((B * S, D), jnp.float32)],  # activation carry
        compiler_params=pltpu.CompilerParams(
            dimension_semantics=("arbitrary",)),
    )(x_flat, wqkv, bqkv, wo, smalls, w1, b1, w2, head_ln)


def transformer_forward(tokens, params, num_heads):
    """Equivalent of Transformer.forward(x, mask=None) in eval mode."""
    B, T = tokens.shape
    D = params["embedding"].shape[-1]
    x = jnp.take(params["embedding"], tokens, axis=0)                # (B, T, D)
    cls = jnp.broadcast_to(params["cls_token"], (B, 1, D))
    x = jnp.concatenate([cls, x], axis=1)                            # (B, T+1, D)
    x = x + params["pos_embedding"][:, :T + 1]
    # dropout -> identity (eval mode); mask=None
    return run_transformer_layers(x, params, num_heads)              # (B, D)


# ---------------------------------------------------------------------------
# Pure-JAX reference (for correctness check)
#   bf16_matmul=True mirrors the kernel's bf16-operand / f32-accumulate matmuls
#   bf16_matmul=False is the exact f32 semantics of the original module
# ---------------------------------------------------------------------------
def reference_forward(tokens, params, num_heads, *, bf16_matmul=False):
    hp = jax.lax.Precision.HIGHEST
    cast = (lambda a: a.astype(jnp.bfloat16)) if bf16_matmul else (lambda a: a)

    def ln(v, w, b):
        m = jnp.mean(v, -1, keepdims=True)
        var = jnp.mean((v - m) ** 2, -1, keepdims=True)
        return (v - m) * jax.lax.rsqrt(var + EPS) * w + b

    def mm(a, w):
        return jnp.einsum("bsd,de->bse", cast(a), cast(w),
                          preferred_element_type=jnp.float32, precision=hp)

    B, T = tokens.shape
    D = params["embedding"].shape[-1]
    hd = D // num_heads
    x = jnp.take(params["embedding"], tokens, axis=0)
    cls = jnp.broadcast_to(params["cls_token"], (B, 1, D))
    x = jnp.concatenate([cls, x], 1) + params["pos_embedding"][:, :T + 1]
    S = T + 1
    for p in params["layers"]:
        xn = ln(x, p["ln1w"][0], p["ln1b"][0])
        q = mm(xn, p["wq"]) + p["bq"][0]
        k = mm(xn, p["wk"]) + p["bk"][0]
        v = mm(xn, p["wv"]) + p["bv"][0]
        qh = q.reshape(B, S, num_heads, hd).transpose(0, 2, 1, 3)
        kh = k.reshape(B, S, num_heads, hd).transpose(0, 2, 1, 3)
        vh = v.reshape(B, S, num_heads, hd).transpose(0, 2, 1, 3)
        s = jnp.einsum("bhqd,bhkd->bhqk", cast(qh), cast(kh),
                       preferred_element_type=jnp.float32,
                       precision=hp) * np.float32(1.0 / np.sqrt(hd))
        w_attn = jax.nn.softmax(s, axis=-1)
        y = jnp.einsum("bhqk,bhkd->bhqd", cast(w_attn), cast(vh),
                       preferred_element_type=jnp.float32, precision=hp)
        y = y.transpose(0, 2, 1, 3).reshape(B, S, D)
        attn_out = mm(y, p["wo"]) + p["bo"][0]
        res = x + attn_out
        rn = ln(res, p["ln2w"][0], p["ln2b"][0])
        h1 = mm(rn, p["w1"]) + p["b1"][0]
        g = 0.5 * h1 * (1.0 + jax.lax.erf(h1 * _INV_SQRT2))
        h2 = mm(g, p["w2"]) + p["b2"][0]
        x = h2 + res
    return ln(x[:, 0], params["head_ln_w"][0], params["head_ln_b"][0])


# ---------------------------------------------------------------------------
# Deterministic parameter construction (shapes follow the module's __init__)
# ---------------------------------------------------------------------------
def init_params(key, vocab, D, H_FFN, num_layers, max_seq):
    keys = iter(jax.random.split(key, 8 + 8 * num_layers))

    def nrm(shape, scale):
        return scale * jax.random.normal(next(keys), shape, dtype=jnp.float32)

    params = {
        "embedding": jax.random.normal(next(keys), (vocab, D), dtype=jnp.float32),
        "cls_token": jax.random.normal(next(keys), (1, 1, D), dtype=jnp.float32),
        "pos_embedding": jax.random.normal(next(keys), (1, max_seq, D), dtype=jnp.float32),
        "head_ln_w": jnp.ones((1, D), jnp.float32),
        "head_ln_b": jnp.zeros((1, D), jnp.float32),
        "layers": [],
    }
    for _ in range(num_layers):
        params["layers"].append({
            "wq": nrm((D, D), 0.1), "wk": nrm((D, D), 0.1),
            "wv": nrm((D, D), 0.1), "wo": nrm((D, D), 0.1),
            "bq": jnp.zeros((1, D), jnp.float32), "bk": jnp.zeros((1, D), jnp.float32),
            "bv": jnp.zeros((1, D), jnp.float32), "bo": jnp.zeros((1, D), jnp.float32),
            "ln1w": jnp.ones((1, D), jnp.float32), "ln1b": jnp.zeros((1, D), jnp.float32),
            "ln2w": jnp.ones((1, D), jnp.float32), "ln2b": jnp.zeros((1, D), jnp.float32),
            "w1": nrm((D, H_FFN), 0.1), "b1": nrm((1, H_FFN), 0.01),
            "w2": nrm((H_FFN, D), 0.1), "b2": nrm((1, D), 0.01),
        })
    return params


if __name__ == "__main__":
    # Small config consistent with the module (prenorm, num_heads=1 default,
    # 2 layers); D chosen 128-aligned so the lane axis is dense on TPU.
    B, T = 2, 8
    VOCAB, EMBED_DIM, HIDDEN_DIM = 100, 128, 256
    NUM_HEADS, NUM_LAYERS = 1, 2
    MAX_SEQ = 1 + T  # scaled-down stand-in for the module's hardcoded 1 + 256

    key = jax.random.PRNGKey(0)
    pkey, tkey = jax.random.split(key)
    params = init_params(pkey, VOCAB, EMBED_DIM, HIDDEN_DIM, NUM_LAYERS, MAX_SEQ)
    tokens = jax.random.randint(tkey, (B, T), 0, VOCAB, dtype=jnp.int32)

    out = jax.block_until_ready(transformer_forward(tokens, params, NUM_HEADS))
    assert out.shape == (B, EMBED_DIM)

    # Tight check against a reference mirroring the kernel's bf16/f32-acc matmuls.
    ref_bf16 = reference_forward(tokens, params, NUM_HEADS, bf16_matmul=True)
    np.testing.assert_allclose(np.asarray(out), np.asarray(ref_bf16),
                               rtol=1e-2, atol=1e-2)
    # Loose check against the exact f32 semantics of the original module.
    ref_f32 = reference_forward(tokens, params, NUM_HEADS, bf16_matmul=False)
    np.testing.assert_allclose(np.asarray(out), np.asarray(ref_f32),
                               rtol=1e-1, atol=1e-1)

    print("KERNEL_OK")
</pallas_src>

<mosaic_0001>
module attributes {stable_mosaic.version = 11 : i64} {
  func.func @transformer_kernel(%arg0: i32, %arg1: memref<32x128xf32, #tpu.memory_space<vmem>>, %arg2: memref<1x128x384xbf16, #tpu.memory_space<vmem>>, %arg3: memref<1x1x384xf32, #tpu.memory_space<vmem>>, %arg4: memref<1x128x128xbf16, #tpu.memory_space<vmem>>, %arg5: memref<1x6x128xf32, #tpu.memory_space<vmem>>, %arg6: memref<1x128x256xbf16, #tpu.memory_space<vmem>>, %arg7: memref<1x1x256xf32, #tpu.memory_space<vmem>>, %arg8: memref<1x256x128xbf16, #tpu.memory_space<vmem>>, %arg9: memref<2x128xf32, #tpu.memory_space<vmem>>, %arg10: memref<2x128xf32, #tpu.memory_space<vmem>>, %arg11: memref<32x128xf32, #tpu.memory_space<vmem>>) attributes {dimension_semantics = [#tpu.dimension_semantics<arbitrary>], iteration_bounds = array<i64: 2>, scalar_prefetch = 0 : i64, scratch_operands = 1 : i64, tpu.core_type = #tpu.core_type<tc>, window_params = [{pipeline_mode = #tpu.pipeline_mode<synchronous>, transform_indices = @transform_0, window_bounds = array<i64: 32, 128>}, {transform_indices = @transform_1, window_bounds = array<i64: 1, 128, 384>}, {transform_indices = @transform_2, window_bounds = array<i64: 1, 1, 384>}, {transform_indices = @transform_3, window_bounds = array<i64: 1, 128, 128>}, {transform_indices = @transform_4, window_bounds = array<i64: 1, 6, 128>}, {transform_indices = @transform_5, window_bounds = array<i64: 1, 128, 256>}, {transform_indices = @transform_6, window_bounds = array<i64: 1, 1, 256>}, {transform_indices = @transform_7, window_bounds = array<i64: 1, 256, 128>}, {pipeline_mode = #tpu.pipeline_mode<synchronous>, transform_indices = @transform_8, window_bounds = array<i64: 2, 128>}, {pipeline_mode = #tpu.pipeline_mode<synchronous>, transform_indices = @transform_9, window_bounds = array<i64: 2, 128>}]} {
    %c0_i32 = arith.constant 0 : i32
    %0 = arith.cmpi eq, %arg0, %c0_i32 : i32
    %1 = arith.extui %0 : i1 to i32
    %c0_i32_0 = arith.constant 0 : i32
    %2 = arith.cmpi ne, %1, %c0_i32_0 : i32
    scf.if %2 {
      %c0_58 = arith.constant 0 : index
      %c0_59 = arith.constant 0 : index
      %140 = vector.load %arg1[%c0_58, %c0_59] : memref<32x128xf32, #tpu.memory_space<vmem>>, vector<32x128xf32>
      %c0_60 = arith.constant 0 : index
      %c0_61 = arith.constant 0 : index
      %141 = vector.load %arg11[%c0_60, %c0_61] : memref<32x128xf32, #tpu.memory_space<vmem>>, vector<32x128xf32>
      tpu.vector_store %arg11[%c0_60, %c0_61], %140 {strides = array<i32>} : memref<32x128xf32, #tpu.memory_space<vmem>>, vector<32x128xf32>,
    } else {
    }
    %c0 = arith.constant 0 : index
    %c0_1 = arith.constant 0 : index
    %3 = vector.load %arg11[%c0, %c0_1] : memref<32x128xf32, #tpu.memory_space<vmem>>, vector<32x128xf32>
    %c0_2 = arith.constant 0 : index
    %c0_3 = arith.constant 0 : index
    %c0_4 = arith.constant 0 : index
    %4 = vector.load %arg5[%c0_2, %c0_3, %c0_4] : memref<1x6x128xf32, #tpu.memory_space<vmem>>, vector<1x1x128xf32>
    %5 = vector.shape_cast %4 : vector<1x1x128xf32> to vector<128xf32>
    %c0_5 = arith.constant 0 : index
    %c1 = arith.constant 1 : index
    %c0_6 = arith.constant 0 : index
    %6 = vector.load %arg5[%c0_5, %c1, %c0_6] : memref<1x6x128xf32, #tpu.memory_space<vmem>>, vector<1x1x128xf32>
    %7 = vector.shape_cast %6 : vector<1x1x128xf32> to vector<128xf32>
    %c0_7 = arith.constant 0 : index
    %c2 = arith.constant 2 : index
    %c0_8 = arith.constant 0 : index
    %8 = vector.load %arg5[%c0_7, %c2, %c0_8] : memref<1x6x128xf32, #tpu.memory_space<vmem>>, vector<1x1x128xf32>
    %9 = vector.shape_cast %8 : vector<1x1x128xf32> to vector<128xf32>
    %c0_9 = arith.constant 0 : index
    %c3 = arith.constant 3 : index
    %c0_10 = arith.constant 0 : index
    %10 = vector.load %arg5[%c0_9, %c3, %c0_10] : memref<1x6x128xf32, #tpu.memory_space<vmem>>, vector<1x1x128xf32>
    %11 = vector.shape_cast %10 : vector<1x1x128xf32> to vector<128xf32>
    %c0_11 = arith.constant 0 : index
    %c4 = arith.constant 4 : index
    %c0_12 = arith.constant 0 : index
    %12 = vector.load %arg5[%c0_11, %c4, %c0_12] : memref<1x6x128xf32, #tpu.memory_space<vmem>>, vector<1x1x128xf32>
    %13 = vector.shape_cast %12 : vector<1x1x128xf32> to vector<128xf32>
    %c0_13 = arith.constant 0 : index
    %c5 = arith.constant 5 : index
    %c0_14 = arith.constant 0 : index
    %14 = vector.load %arg5[%c0_13, %c5, %c0_14] : memref<1x6x128xf32, #tpu.memory_space<vmem>>, vector<1x1x128xf32>
    %15 = vector.shape_cast %14 : vector<1x1x128xf32> to vector<128xf32>
    %cst = arith.constant dense<0.000000e+00> : vector<32xf32>
    %16 = vector.multi_reduction <add>, %3, %cst [1] : vector<32x128xf32> to vector<32xf32>
    %17 = vector.shape_cast %16 : vector<32xf32> to vector<32x1xf32>
    %cst_15 = arith.constant 1.280000e+02 : f32
    %18 = vector.broadcast %cst_15 : f32 to vector<32x1xf32>
    %19 = arith.divf %17, %18 : vector<32x1xf32>
    %20 = vector.broadcast %19 : vector<32x1xf32> to vector<32x128xf32>
    %21 = arith.subf %3, %20 : vector<32x128xf32>
    %22 = arith.mulf %21, %21 : vector<32x128xf32>
    %cst_16 = arith.constant dense<0.000000e+00> : vector<32xf32>
    %23 = vector.multi_reduction <add>, %22, %cst_16 [1] : vector<32x128xf32> to vector<32xf32>
    %24 = vector.shape_cast %23 : vector<32xf32> to vector<32x1xf32>
    %cst_17 = arith.constant 1.280000e+02 : f32
    %25 = vector.broadcast %cst_17 : f32 to vector<32x1xf32>
    %26 = arith.divf %24, %25 : vector<32x1xf32>
    %27 = vector.broadcast %19 : vector<32x1xf32> to vector<32x128xf32>
    %28 = arith.subf %3, %27 : vector<32x128xf32>
    %cst_18 = arith.constant 9.99999974E-6 : f32
    %29 = vector.broadcast %cst_18 : f32 to vector<32x1xf32>
    %30 = arith.addf %26, %29 : vector<32x1xf32>
    %31 = math.rsqrt %30 : vector<32x1xf32>
    %32 = vector.broadcast %31 : vector<32x1xf32> to vector<32x128xf32>
    %33 = arith.mulf %28, %32 : vector<32x128xf32>
    %34 = vector.shape_cast %5 : vector<128xf32> to vector<1x128xf32>
    %35 = vector.broadcast %34 : vector<1x128xf32> to vector<32x128xf32>
    %36 = arith.mulf %33, %35 : vector<32x128xf32>
    %37 = vector.shape_cast %7 : vector<128xf32> to vector<1x128xf32>
    %38 = vector.broadcast %37 : vector<1x128xf32> to vector<32x128xf32>
    %39 = arith.addf %36, %38 : vector<32x128xf32>
    %40 = arith.truncf %39 : vector<32x128xf32> to vector<32x128xbf16>
    %c0_19 = arith.constant 0 : index
    %c0_20 = arith.constant 0 : index
    %c0_21 = arith.constant 0 : index
    %41 = vector.load %arg2[%c0_19, %c0_20, %c0_21] : memref<1x128x384xbf16, #tpu.memory_space<vmem>>, vector<1x128x384xbf16>
    %42 = vector.shape_cast %41 : vector<1x128x384xbf16> to vector<128x384xbf16>
    %cst_22 = arith.constant dense<0.000000e+00> : vector<32x384xf32>
    %43 = tpu.matmul %40, %42, %cst_22 {dimension_numbers = #tpu.dot_dimension_numbers<[1], [0], [0], [1], [0, 0, 1, 1], [], []>} : vector<32x128xbf16>, vector<128x384xbf16>, vector<32x384xf32> -> vector<32x384xf32>
    %c0_23 = arith.constant 0 : index
    %c0_24 = arith.constant 0 : index
    %c0_25 = arith.constant 0 : index
    %44 = vector.load %arg3[%c0_23, %c0_24, %c0_25] : memref<1x1x384xf32, #tpu.memory_space<vmem>>, vector<1x1x384xf32>
    %45 = vector.shape_cast %44 : vector<1x1x384xf32> to vector<384xf32>
    %46 = vector.shape_cast %45 : vector<384xf32> to vector<1x384xf32>
    %47 = vector.broadcast %46 : vector<1x384xf32> to vector<32x384xf32>
    %48 = arith.addf %43, %47 : vector<32x384xf32>
    %49 = vector.extract_strided_slice %48 {offsets = [0, 0], sizes = [32, 128], strides = [1, 1]} : vector<32x384xf32> to vector<32x128xf32>
    %50 = vector.extract_strided_slice %48 {offsets = [0, 128], sizes = [32, 128], strides = [1, 1]} : vector<32x384xf32> to vector<32x128xf32>
    %51 = vector.extract_strided_slice %48 {offsets = [0, 256], sizes = [32, 128], strides = [1, 1]} : vector<32x384xf32> to vector<32x128xf32>
    %52 = vector.shape_cast %49 : vector<32x128xf32> to vector<2x16x128xf32>
    %53 = vector.shape_cast %50 : vector<32x128xf32> to vector<2x16x128xf32>
    %54 = vector.shape_cast %51 : vector<32x128xf32> to vector<2x16x128xf32>
    %55 = arith.truncf %52 : vector<2x16x128xf32> to vector<2x16x128xbf16>
    %56 = arith.truncf %53 : vector<2x16x128xf32> to vector<2x16x128xbf16>
    %cst_26 = arith.constant dense<0.000000e+00> : vector<2x16x16xf32>
    %57 = tpu.matmul %55, %56, %cst_26 {dimension_numbers = #tpu.dot_dimension_numbers<[2], [2], [1], [1], [0, 0, 0, 1, 1, 1], [0], [0]>} : vector<2x16x128xbf16>, vector<2x16x128xbf16>, vector<2x16x16xf32> -> vector<2x16x16xf32>
    %cst_27 = arith.constant 0.0883883461 : f32
    %58 = vector.broadcast %cst_27 : f32 to vector<2x16x16xf32>
    %59 = arith.mulf %57, %58 : vector<2x16x16xf32>
    %60 = tpu.iota {dimensions = array<i32: 2>} : vector<2x16x16xi32>
    %c9_i32 = arith.constant 9 : i32
    %61 = vector.broadcast %c9_i32 : i32 to vector<2x16x16xi32>
    %62 = arith.cmpi slt, %60, %61 : vector<2x16x16xi32>
    %cst_28 = arith.constant -1.000000e+30 : f32
    %63 = vector.broadcast %cst_28 : f32 to vector<2x16x16xf32>
    %64 = arith.select %62, %59, %63 : vector<2x16x16xi1>, vector<2x16x16xf32>
    %cst_29 = arith.constant dense<0xFF800000> : vector<2x16xf32>
    %65 = vector.multi_reduction <maximumf>, %64, %cst_29 [2] : vector<2x16x16xf32> to vector<2x16xf32>
    %66 = vector.shape_cast %65 : vector<2x16xf32> to vector<2x16x1xf32>
    %67 = vector.broadcast %66 : vector<2x16x1xf32> to vector<2x16x16xf32>
    %68 = arith.subf %64, %67 : vector<2x16x16xf32>
    %69 = math.exp %68 : vector<2x16x16xf32>
    %cst_30 = arith.constant dense<0.000000e+00> : vector<2x16xf32>
    %70 = vector.multi_reduction <add>, %69, %cst_30 [2] : vector<2x16x16xf32> to vector<2x16xf32>
    %71 = vector.shape_cast %70 : vector<2x16xf32> to vector<2x16x1xf32>
    %72 = tpu.reciprocal %71 {approx = true} : vector<2x16x1xf32> -> vector<2x16x1xf32>
    %73 = vector.broadcast %72 : vector<2x16x1xf32> to vector<2x16x16xf32>
    %74 = arith.mulf %69, %73 : vector<2x16x16xf32>
    %75 = arith.truncf %74 : vector<2x16x16xf32> to vector<2x16x16xbf16>
    %76 = arith.truncf %54 : vector<2x16x128xf32> to vector<2x16x128xbf16>
    %cst_31 = arith.constant dense<0.000000e+00> : vector<2x16x128xf32>
    %77 = tpu.matmul %75, %76, %cst_31 {dimension_numbers = #tpu.dot_dimension_numbers<[2], [1], [1], [2], [0, 0, 0, 1, 1, 2], [0], [0]>} : vector<2x16x16xbf16>, vector<2x16x128xbf16>, vector<2x16x128xf32> -> vector<2x16x128xf32>
    %78 = vector.shape_cast %77 : vector<2x16x128xf32> to vector<32x128xf32>
    %79 = arith.truncf %78 : vector<32x128xf32> to vector<32x128xbf16>
    %c0_32 = arith.constant 0 : index
    %c0_33 = arith.constant 0 : index
    %c0_34 = arith.constant 0 : index
    %80 = vector.load %arg4[%c0_32, %c0_33, %c0_34] : memref<1x128x128xbf16, #tpu.memory_space<vmem>>, vector<1x128x128xbf16>
    %81 = vector.shape_cast %80 : vector<1x128x128xbf16> to vector<128x128xbf16>
    %cst_35 = arith.constant dense<0.000000e+00> : vector<32x128xf32>
    %82 = tpu.matmul %79, %81, %cst_35 {dimension_numbers = #tpu.dot_dimension_numbers<[1], [0], [0], [1], [0, 0, 1, 1], [], []>} : vector<32x128xbf16>, vector<128x128xbf16>, vector<32x128xf32> -> vector<32x128xf32>
    %83 = vector.shape_cast %13 : vector<128xf32> to vector<1x128xf32>
    %84 = vector.broadcast %83 : vector<1x128xf32> to vector<32x128xf32>
    %85 = arith.addf %82, %84 : vector<32x128xf32>
    %86 = arith.addf %3, %85 : vector<32x128xf32>
    %cst_36 = arith.constant dense<0.000000e+00> : vector<32xf32>
    %87 = vector.multi_reduction <add>, %86, %cst_36 [1] : vector<32x128xf32> to vector<32xf32>
    %88 = vector.shape_cast %87 : vector<32xf32> to vector<32x1xf32>
    %cst_37 = arith.constant 1.280000e+02 : f32
    %89 = vector.broadcast %cst_37 : f32 to vector<32x1xf32>
    %90 = arith.divf %88, %89 : vector<32x1xf32>
    %91 = vector.broadcast %90 : vector<32x1xf32> to vector<32x128xf32>
    %92 = arith.subf %86, %91 : vector<32x128xf32>
    %93 = arith.mulf %92, %92 : vector<32x128xf32>
    %cst_38 = arith.constant dense<0.000000e+00> : vector<32xf32>
    %94 = vector.multi_reduction <add>, %93, %cst_38 [1] : vector<32x128xf32> to vector<32xf32>
    %95 = vector.shape_cast %94 : vector<32xf32> to vector<32x1xf32>
    %cst_39 = arith.constant 1.280000e+02 : f32
    %96 = vector.broadcast %cst_39 : f32 to vector<32x1xf32>
    %97 = arith.divf %95, %96 : vector<32x1xf32>
    %98 = vector.broadcast %90 : vector<32x1xf32> to vector<32x128xf32>
    %99 = arith.subf %86, %98 : vector<32x128xf32>
    %cst_40 = arith.constant 9.99999974E-6 : f32
    %100 = vector.broadcast %cst_40 : f32 to vector<32x1xf32>
    %101 = arith.addf %97, %100 : vector<32x1xf32>
    %102 = math.rsqrt %101 : vector<32x1xf32>
    %103 = vector.broadcast %102 : vector<32x1xf32> to vector<32x128xf32>
    %104 = arith.mulf %99, %103 : vector<32x128xf32>
    %105 = vector.shape_cast %9 : vector<128xf32> to vector<1x128xf32>
    %106 = vector.broadcast %105 : vector<1x128xf32> to vector<32x128xf32>
    %107 = arith.mulf %104, %106 : vector<32x128xf32>
    %108 = vector.shape_cast %11 : vector<128xf32> to vector<1x128xf32>
    %109 = vector.broadcast %108 : vector<1x128xf32> to vector<32x128xf32>
    %110 = arith.addf %107, %109 : vector<32x128xf32>
    %111 = arith.truncf %110 : vector<32x128xf32> to vector<32x128xbf16>
    %c0_41 = arith.constant 0 : index
    %c0_42 = arith.constant 0 : index
    %c0_43 = arith.constant 0 : index
    %112 = vector.load %arg6[%c0_41, %c0_42, %c0_43] : memref<1x128x256xbf16, #tpu.memory_space<vmem>>, vector<1x128x256xbf16>
    %113 = vector.shape_cast %112 : vector<1x128x256xbf16> to vector<128x256xbf16>
    %cst_44 = arith.constant dense<0.000000e+00> : vector<32x256xf32>
    %114 = tpu.matmul %111, %113, %cst_44 {dimension_numbers = #tpu.dot_dimension_numbers<[1], [0], [0], [1], [0, 0, 1, 1], [], []>} : vector<32x128xbf16>, vector<128x256xbf16>, vector<32x256xf32> -> vector<32x256xf32>
    %c0_45 = arith.constant 0 : index
    %c0_46 = arith.constant 0 : index
    %c0_47 = arith.constant 0 : index
    %115 = vector.load %arg7[%c0_45, %c0_46, %c0_47] : memref<1x1x256xf32, #tpu.memory_space<vmem>>, vector<1x1x256xf32>
    %116 = vector.shape_cast %115 : vector<1x1x256xf32> to vector<256xf32>
    %117 = vector.shape_cast %116 : vector<256xf32> to vector<1x256xf32>
    %118 = vector.broadcast %117 : vector<1x256xf32> to vector<32x256xf32>
    %119 = arith.addf %114, %118 : vector<32x256xf32>
    %cst_48 = arith.constant 5.000000e-01 : f32
    %120 = vector.broadcast %cst_48 : f32 to vector<32x256xf32>
    %121 = arith.mulf %120, %119 : vector<32x256xf32>
    %cst_49 = arith.constant 0.707106769 : f32
    %122 = vector.broadcast %cst_49 : f32 to vector<32x256xf32>
    %123 = arith.mulf %119, %122 : vector<32x256xf32>
    %124 = math.erf %123 : vector<32x256xf32>
    %cst_50 = arith.constant 1.000000e+00 : f32
    %125 = vector.broadcast %cst_50 : f32 to vector<32x256xf32>
    %126 = arith.addf %125, %124 : vector<32x256xf32>
    %127 = arith.mulf %121, %126 : vector<32x256xf32>
    %128 = arith.truncf %127 : vector<32x256xf32> to vector<32x256xbf16>
    %c0_51 = arith.constant 0 : index
    %c0_52 = arith.constant 0 : index
    %c0_53 = arith.constant 0 : index
    %129 = vector.load %arg8[%c0_51, %c0_52, %c0_53] : memref<1x256x128xbf16, #tpu.memory_space<vmem>>, vector<1x256x128xbf16>
    %130 = vector.shape_cast %129 : vector<1x256x128xbf16> to vector<256x128xbf16>
    %cst_54 = arith.constant dense<0.000000e+00> : vector<32x128xf32>
    %131 = tpu.matmul %128, %130, %cst_54 {dimension_numbers = #tpu.dot_dimension_numbers<[1], [0], [0], [1], [0, 0, 1, 1], [], []>} : vector<32x256xbf16>, vector<256x128xbf16>, vector<32x128xf32> -> vector<32x128xf32>
    %132 = vector.shape_cast %15 : vector<128xf32> to vector<1x128xf32>
    %133 = vector.broadcast %132 : vector<1x128xf32> to vector<32x128xf32>
    %134 = arith.addf %131, %133 : vector<32x128xf32>
    %135 = arith.addf %134, %86 : vector<32x128xf32>
    %c0_55 = arith.constant 0 : index
    %c0_56 = arith.constant 0 : index
    %136 = vector.load %arg11[%c0_55, %c0_56] : memref<32x128xf32, #tpu.memory_space<vmem>>, vector<32x128xf32>
    tpu.vector_store %arg11[%c0_55, %c0_56], %135 {strides = array<i32>} : memref<32x128xf32, #tpu.memory_space<vmem>>, vector<32x128xf32>,
    %c1_i32 = arith.constant 1 : i32
    %137 = arith.cmpi eq, %arg0, %c1_i32 : i32
    %138 = arith.extui %137 : i1 to i32
    %c0_i32_57 = arith.constant 0 : i32
    %139 = arith.cmpi ne, %138, %c0_i32_57 : i32
    scf.if %139 {
      %140 = vector.shape_cast %135 : vector<32x128xf32> to vector<2x16x128xf32>
      %141 = vector.extract_strided_slice %140 {offsets = [0, 0, 0], sizes = [2, 1, 128], strides = [1, 1, 1]} : vector<2x16x128xf32> to vector<2x1x128xf32>
      %142 = vector.shape_cast %141 : vector<2x1x128xf32> to vector<2x128xf32>
      %c0_58 = arith.constant 0 : index
      %c0_59 = arith.constant 0 : index
      %143 = vector.load %arg9[%c0_58, %c0_59] : memref<2x128xf32, #tpu.memory_space<vmem>>, vector<1x128xf32>
      %144 = vector.shape_cast %143 : vector<1x128xf32> to vector<128xf32>
      %c1_60 = arith.constant 1 : index
      %c0_61 = arith.constant 0 : index
      %145 = vector.load %arg9[%c1_60, %c0_61] : memref<2x128xf32, #tpu.memory_space<vmem>>, vector<1x128xf32>
      %146 = vector.shape_cast %145 : vector<1x128xf32> to vector<128xf32>
      %cst_62 = arith.constant dense<0.000000e+00> : vector<2xf32>
      %147 = vector.multi_reduction <add>, %142, %cst_62 [1] : vector<2x128xf32> to vector<2xf32>
      %148 = vector.shape_cast %147 : vector<2xf32> to vector<2x1xf32>
      %cst_63 = arith.constant 1.280000e+02 : f32
      %149 = vector.broadcast %cst_63 : f32 to vector<2x1xf32>
      %150 = arith.divf %148, %149 : vector<2x1xf32>
      %151 = vector.broadcast %150 : vector<2x1xf32> to vector<2x128xf32>
      %152 = arith.subf %142, %151 : vector<2x128xf32>
      %153 = arith.mulf %152, %152 : vector<2x128xf32>
      %cst_64 = arith.constant dense<0.000000e+00> : vector<2xf32>
      %154 = vector.multi_reduction <add>, %153, %cst_64 [1] : vector<2x128xf32> to vector<2xf32>
      %155 = vector.shape_cast %154 : vector<2xf32> to vector<2x1xf32>
      %cst_65 = arith.constant 1.280000e+02 : f32
      %156 = vector.broadcast %cst_65 : f32 to vector<2x1xf32>
      %157 = arith.divf %155, %156 : vector<2x1xf32>
      %158 = vector.broadcast %150 : vector<2x1xf32> to vector<2x128xf32>
      %159 = arith.subf %142, %158 : vector<2x128xf32>
      %cst_66 = arith.constant 9.99999974E-6 : f32
      %160 = vector.broadcast %cst_66 : f32 to vector<2x1xf32>
      %161 = arith.addf %157, %160 : vector<2x1xf32>
      %162 = math.rsqrt %161 : vector<2x1xf32>
      %163 = vector.broadcast %162 : vector<2x1xf32> to vector<2x128xf32>
      %164 = arith.mulf %159, %163 : vector<2x128xf32>
      %165 = vector.shape_cast %144 : vector<128xf32> to vector<1x128xf32>
      %166 = vector.broadcast %165 : vector<1x128xf32> to vector<2x128xf32>
      %167 = arith.mulf %164, %166 : vector<2x128xf32>
      %168 = vector.shape_cast %146 : vector<128xf32> to vector<1x128xf32>
      %169 = vector.broadcast %168 : vector<1x128xf32> to vector<2x128xf32>
      %170 = arith.addf %167, %169 : vector<2x128xf32>
      %c0_67 = arith.constant 0 : index
      %c0_68 = arith.constant 0 : index
      %171 = vector.load %arg10[%c0_67, %c0_68] : memref<2x128xf32, #tpu.memory_space<vmem>>, vector<2x128xf32>
      tpu.vector_store %arg10[%c0_67, %c0_68], %170 {strides = array<i32>} : memref<2x128xf32, #tpu.memory_space<vmem>>, vector<2x128xf32>,
    } else {
    }
    return
  }
  func.func @transform_0(%arg0: i32) -> (i32, i32) {
    %c0_i32 = arith.constant 0 : i32
    %c0_i32_0 = arith.constant 0 : i32
    %c0_i32_1 = arith.constant 0 : i32
    return %c0_i32, %c0_i32_0 : i32, i32
  }
  func.func @transform_1(%arg0: i32) -> (i32, i32, i32) {
    %c0_i32 = arith.constant 0 : i32
    %c0_i32_0 = arith.constant 0 : i32
    %c0_i32_1 = arith.constant 0 : i32
    return %arg0, %c0_i32, %c0_i32_0 : i32, i32, i32
  }
  func.func @transform_2(%arg0: i32) -> (i32, i32, i32) {
    %c0_i32 = arith.constant 0 : i32
    %c0_i32_0 = arith.constant 0 : i32
    %c0_i32_1 = arith.constant 0 : i32
    return %arg0, %c0_i32, %c0_i32_0 : i32, i32, i32
  }
  func.func @transform_3(%arg0: i32) -> (i32, i32, i32) {
    %c0_i32 = arith.constant 0 : i32
    %c0_i32_0 = arith.constant 0 : i32
    %c0_i32_1 = arith.constant 0 : i32
    return %arg0, %c0_i32, %c0_i32_0 : i32, i32, i32
  }
  func.func @transform_4(%arg0: i32) -> (i32, i32, i32) {
    %c0_i32 = arith.constant 0 : i32
    %c0_i32_0 = arith.constant 0 : i32
    %c0_i32_1 = arith.constant 0 : i32
    return %arg0, %c0_i32, %c0_i32_0 : i32, i32, i32
  }
  func.func @transform_5(%arg0: i32) -> (i32, i32, i32) {
    %c0_i32 = arith.constant 0 : i32
    %c0_i32_0 = arith.constant 0 : i32
    %c0_i32_1 = arith.constant 0 : i32
    return %arg0, %c0_i32, %c0_i32_0 : i32, i32, i32
  }
  func.func @transform_6(%arg0: i32) -> (i32, i32, i32) {
    %c0_i32 = arith.constant 0 : i32
    %c0_i32_0 = arith.constant 0 : i32
    %c0_i32_1 = arith.constant 0 : i32
    return %arg0, %c0_i32, %c0_i32_0 : i32, i32, i32
  }
  func.func @transform_7(%arg0: i32) -> (i32, i32, i32) {
    %c0_i32 = arith.constant 0 : i32
    %c0_i32_0 = arith.constant 0 : i32
    %c0_i32_1 = arith.constant 0 : i32
    return %arg0, %c0_i32, %c0_i32_0 : i32, i32, i32
  }
  func.func @transform_8(%arg0: i32) -> (i32, i32) {
    %c0_i32 = arith.constant 0 : i32
    %c0_i32_0 = arith.constant 0 : i32
    %c0_i32_1 = arith.constant 0 : i32
    return %c0_i32, %c0_i32_0 : i32, i32
  }
  func.func @transform_9(%arg0: i32) -> (i32, i32) {
    %c0_i32 = arith.constant 0 : i32
    %c0_i32_0 = arith.constant 0 : i32
    %c0_i32_1 = arith.constant 0 : i32
    return %c0_i32, %c0_i32_0 : i32, i32
  }
}

</mosaic_0001>

<llo_original>
// kernel: tpu_custom_call.1
$region0: #{tpu_custom_call.1}
  #allocation0 [shape = 'u32[]', space=smem, size = 0x4, offset = 0x4, fixed_abs, tag = 'smem constant byte address 0x4 - core index']
  #allocation1 [shape = 'u32[144,128]{1,0:T(1,128)}', space=vmem, size = 0x12000, scoped, tag = 'internal scratch']
  #allocation2 [shape = 'f32[32,128]{1,0:T(8,128)}', space=vmem, size = 0x4000, scoped, tag = 'scratch operand']
  %s0 = inlined_call_operand.hbm [shape: f32[32,128], index: 0, kind: input, shape index: {}]
  %s1 = inlined_call_operand.hbm [shape: bf16[2,128,384], index: 1, kind: input, shape index: {}]
  %s2 = inlined_call_operand.vmem [shape: f32[2,1,384], index: 2, kind: input, shape index: {}]
  %s3 = inlined_call_operand.hbm [shape: bf16[2,128,128], index: 3, kind: input, shape index: {}]
  %s4 = inlined_call_operand.vmem [shape: f32[2,6,128], index: 4, kind: input, shape index: {}]
  %s5 = inlined_call_operand.hbm [shape: bf16[2,128,256], index: 5, kind: input, shape index: {}]
  %s6 = inlined_call_operand.vmem [shape: f32[2,1,256], index: 6, kind: input, shape index: {}]
  %s7 = inlined_call_operand.hbm [shape: bf16[2,256,128], index: 7, kind: input, shape index: {}]
  %s8 = inlined_call_operand.vmem [shape: f32[2,128], index: 8, kind: input, shape index: {}]
  %s9 = inlined_call_operand.hbm [shape: f32[2,128], index: 9, kind: output, shape index: {}]
  %s10 = sld [smem:[#allocation0]]
  $region97: #{tpu_custom_call.1} parent=0
    _
  %s12 = ssub.s32 1, %s10
  %s13 = scalar_select 0, %s12, %s10
  $region1: #{tpu_custom_call.1} parent=0
    #allocation3 [shape = 'u8[16384]{0}', space=vmem, size = 0x4000, scoped, tag = 'input window, operand 0, single buffered']
    #allocation4 [shape = 's32[2]{0}', space=sflag, size = 0x8, scoped, tag = 'scoped memory for tpu_custom_call.1']
    #allocation5 [shape = 's32[2]{0}', space=sflag, size = 0x8, scoped, tag = 'scoped memory for tpu_custom_call.1']
    #allocation6 [shape = 'u8[196608]{0}', space=vmem, size = 0x30000, scoped, tag = 'input window, operand 1']
    #allocation7 [shape = 's32[2]{0}', space=sflag, size = 0x8, scoped, tag = 'scoped memory for tpu_custom_call.1']
    #allocation8 [shape = 'u8[65536]{0}', space=vmem, size = 0x10000, scoped, tag = 'input window, operand 3']
    #allocation9 [shape = 'u8[131072]{0}', space=vmem, size = 0x20000, scoped, tag = 'input window, operand 5']
    #allocation10 [shape = 's32[2]{0}', space=sflag, size = 0x8, scoped, tag = 'scoped memory for tpu_custom_call.1']
    #allocation11 [shape = 'u8[131072]{0}', space=vmem, size = 0x20000, scoped, tag = 'input window, operand 7']
    #allocation12 [shape = 'u8[1024]{0}', space=vmem, size = 0x400, scoped, tag = 'output window, operand 0, single buffered']
    %14 = vsyncpa [#allocation4], 0
    %15 = vsyncpa [#allocation7], 0
    %s16 = scalar_lea.sflag [#allocation7], 1
    %17 = vsyncpa %s16, 0
    %18 = vsyncpa [#allocation10], 0
    %s19 = scalar_lea.sflag [#allocation10], 1
    %20 = vsyncpa %s19, 0
    %21 = vsyncpa [#allocation5], 0
    loop: start=0, step=1, limit=4
    $region2: #{tpu_custom_call.1} parent=1 // loop_pre_header
      _
    $region3: #{tpu_custom_call.1} parent=1 // loop_header
      %s23 = sphi 0, %s27
      %p24 = scmp.ge.s32.totalorder %s23, 4
      %s31 = sphi 0, %s31
      %s33 = sphi 0, %s31
      %s34 = sphi 0, %s33
      %s48 = sphi 0, %s34
      %s54 = sphi 0, %s56
      %s57 = sphi 0, %s54
      %s58 = sphi 0, %s57
      %s74 = sphi 0, %s58
      %s80 = sphi 0, %s82
      %s83 = sphi 0, %s80
      %s84 = sphi 0, %s83
      %s100 = sphi 0, %s84
      %s106 = sphi 0, %s108
      %s109 = sphi 0, %s106
      %s110 = sphi 0, %s109
      %s126 = sphi 0, %s110
      %s132 = sphi 0, %s134
      %s135 = sphi 0, %s132
      %s136 = sphi 0, %s135
      %s152 = sphi 0, %s136
      %s158 = sphi 0, %s160
      %s161 = sphi 0, %s158
      %s162 = sphi 0, %s161
      %s178 = sphi 0, %s162
      %s184 = sphi 0, %s186
      %s187 = sphi 0, %s184
      %s188 = sphi 0, %s187
      %s204 = sphi 0, %s188
      %s210 = sphi 0, %s212
      %s213 = sphi 0, %s210
      %s214 = sphi 0, %s213
      %s230 = sphi 0, %s214
      %s234 = sphi 0, %s234
      %s236 = sphi 0, %s234
      %s237 = sphi 0, %s236
      %s251 = sphi 0, %s237
      %s255 = sphi 0, %s255
      %s257 = sphi 0, %s255
      %s258 = sphi 0, %s257
      %s272 = sphi 0, %s258
    $region4: #{tpu_custom_call.1} parent=1 // loop_header_branch
      %26 = sbr.rel (%p24) target = $region8
    $region5: #{tpu_custom_call.1} parent=1 // loop_body
      %s28 = ssub.s32 %s23, 1
      %s29 = ssub.s32 %s23, 2
      %s30 = sadd.s32 %s23, 1
      %s32 = sadd.s32 %s31, 1
      %p35 = scmp.eq.s32.totalorder %s23, 1
      %p36 = scmp.ne.s32.totalorder %s31, %s33
      %p37 = scmp.eq.s32.totalorder %s23, 0
      %p38 = por %p36, %p37
      %p39 = scmp.ne.s32.totalorder %s31, %s33
      %p40 = scmp.eq.s32.totalorder %s28, 1
      %p41 = por %p39, %p40
      %p42 = scmp.ne.s32.totalorder %s33, %s34
      %p43 = scmp.eq.s32.totalorder %s28, 0
      %p44 = por %p42, %p43
      %p45 = scmp.ne.s32.totalorder %s33, %s34
      %p46 = scmp.eq.s32.totalorder %s29, 1
      %p47 = por %p45, %p46
      %p49 = scmp.ne.s32.totalorder %s34, %s48
      %p50 = scmp.eq.s32.totalorder %s29, 0
      %p51 = por %p49, %p50
      %s52 = ssub.s32 %s23, %s30
      %p53 = scmp.eq.s32.totalorder %s52, 0
      %s55 = sadd.s32 %s54, 1
      %s56 = scalar_select %p53, %s54, %s55
      %p59 = pneg %p53
      %p60 = scmp.eq.s32.totalorder %s23, 1
      %p61 = por %p59, %p60
      %p62 = scmp.ne.s32.totalorder %s54, %s57
      %p63 = scmp.eq.s32.totalorder %s23, 0
      %p64 = por %p62, %p63
      %p65 = scmp.ne.s32.totalorder %s54, %s57
      %p66 = scmp.eq.s32.totalorder %s28, 1
      %p67 = por %p65, %p66
      %p68 = scmp.ne.s32.totalorder %s57, %s58
      %p69 = scmp.eq.s32.totalorder %s28, 0
      %p70 = por %p68, %p69
      %p71 = scmp.ne.s32.totalorder %s57, %s58
      %p72 = scmp.eq.s32.totalorder %s29, 1
      %p73 = por %p71, %p72
      %p75 = scmp.ne.s32.totalorder %s58, %s74
      %p76 = scmp.eq.s32.totalorder %s29, 0
      %p77 = por %p75, %p76
      %s78 = ssub.s32 %s23, %s30
      %p79 = scmp.eq.s32.totalorder %s78, 0
      %s81 = sadd.s32 %s80, 1
      %s82 = scalar_select %p79, %s80, %s81
      %p85 = pneg %p79
      %p86 = scmp.eq.s32.totalorder %s23, 1
      %p87 = por %p85, %p86
      %p88 = scmp.ne.s32.totalorder %s80, %s83
      %p89 = scmp.eq.s32.totalorder %s23, 0
      %p90 = por %p88, %p89
      %p91 = scmp.ne.s32.totalorder %s80, %s83
      %p92 = scmp.eq.s32.totalorder %s28, 1
      %p93 = por %p91, %p92
      %p94 = scmp.ne.s32.totalorder %s83, %s84
      %p95 = scmp.eq.s32.totalorder %s28, 0
      %p96 = por %p94, %p95
      %p97 = scmp.ne.s32.totalorder %s83, %s84
      %p98 = scmp.eq.s32.totalorder %s29, 1
      %p99 = por %p97, %p98
      %p101 = scmp.ne.s32.totalorder %s84, %s100
      %p102 = scmp.eq.s32.totalorder %s29, 0
      %p103 = por %p101, %p102
      %s104 = ssub.s32 %s23, %s30
      %p105 = scmp.eq.s32.totalorder %s104, 0
      %s107 = sadd.s32 %s106, 1
      %s108 = scalar_select %p105, %s106, %s107
      %p111 = pneg %p105
      %p112 = scmp.eq.s32.totalorder %s23, 1
      %p113 = por %p111, %p112
      %p114 = scmp.ne.s32.totalorder %s106, %s109
      %p115 = scmp.eq.s32.totalorder %s23, 0
      %p116 = por %p114, %p115
      %p117 = scmp.ne.s32.totalorder %s106, %s109
      %p118 = scmp.eq.s32.totalorder %s28, 1
      %p119 = por %p117, %p118
      %p120 = scmp.ne.s32.totalorder %s109, %s110
      %p121 = scmp.eq.s32.totalorder %s28, 0
      %p122 = por %p120, %p121
      %p123 = scmp.ne.s32.totalorder %s109, %s110
      %p124 = scmp.eq.s32.totalorder %s29, 1
      %p125 = por %p123, %p124
      %p127 = scmp.ne.s32.totalorder %s110, %s126
      %p128 = scmp.eq.s32.totalorder %s29, 0
      %p129 = por %p127, %p128
      %s130 = ssub.s32 %s23, %s30
      %p131 = scmp.eq.s32.totalorder %s130, 0
      %s133 = sadd.s32 %s132, 1
      %s134 = scalar_select %p131, %s132, %s133
      %p137 = pneg %p131
      %p138 = scmp.eq.s32.totalorder %s23, 1
      %p139 = por %p137, %p138
      %p140 = scmp.ne.s32.totalorder %s132, %s135
      %p141 = scmp.eq.s32.totalorder %s23, 0
      %p142 = por %p140, %p141
      %p143 = scmp.ne.s32.totalorder %s132, %s135
      %p144 = scmp.eq.s32.totalorder %s28, 1
      %p145 = por %p143, %p144
      %p146 = scmp.ne.s32.totalorder %s135, %s136
      %p147 = scmp.eq.s32.totalorder %s28, 0
      %p148 = por %p146, %p147
      %p149 = scmp.ne.s32.totalorder %s135, %s136
      %p150 = scmp.eq.s32.totalorder %s29, 1
      %p151 = por %p149, %p150
      %p153 = scmp.ne.s32.totalorder %s136, %s152
      %p154 = scmp.eq.s32.totalorder %s29, 0
      %p155 = por %p153, %p154
      %s156 = ssub.s32 %s23, %s30
      %p157 = scmp.eq.s32.totalorder %s156, 0
      %s159 = sadd.s32 %s158, 1
      %s160 = scalar_select %p157, %s158, %s159
      %p163 = pneg %p157
      %p164 = scmp.eq.s32.totalorder %s23, 1
      %p165 = por %p163, %p164
      %p166 = scmp.ne.s32.totalorder %s158, %s161
      %p167 = scmp.eq.s32.totalorder %s23, 0
      %p168 = por %p166, %p167
      %p169 = scmp.ne.s32.totalorder %s158, %s161
      %p170 = scmp.eq.s32.totalorder %s28, 1
      %p171 = por %p169, %p170
      %p172 = scmp.ne.s32.totalorder %s161, %s162
      %p173 = scmp.eq.s32.totalorder %s28, 0
      %p174 = por %p172, %p173
      %p175 = scmp.ne.s32.totalorder %s161, %s162
      %p176 = scmp.eq.s32.totalorder %s29, 1
      %p177 = por %p175, %p176
      %p179 = scmp.ne.s32.totalorder %s162, %s178
      %p180 = scmp.eq.s32.totalorder %s29, 0
      %p181 = por %p179, %p180
      %s182 = ssub.s32 %s23, %s30
      %p183 = scmp.eq.s32.totalorder %s182, 0
      %s185 = sadd.s32 %s184, 1
      %s186 = scalar_select %p183, %s184, %s185
      %p189 = pneg %p183
      %p190 = scmp.eq.s32.totalorder %s23, 1
      %p191 = por %p189, %p190
      %p192 = scmp.ne.s32.totalorder %s184, %s187
      %p193 = scmp.eq.s32.totalorder %s23, 0
      %p194 = por %p192, %p193
      %p195 = scmp.ne.s32.totalorder %s184, %s187
      %p196 = scmp.eq.s32.totalorder %s28, 1
      %p197 = por %p195, %p196
      %p198 = scmp.ne.s32.totalorder %s187, %s188
      %p199 = scmp.eq.s32.totalorder %s28, 0
      %p200 = por %p198, %p199
      %p201 = scmp.ne.s32.totalorder %s187, %s188
      %p202 = scmp.eq.s32.totalorder %s29, 1
      %p203 = por %p201, %p202
      %p205 = scmp.ne.s32.totalorder %s188, %s204
      %p206 = scmp.eq.s32.totalorder %s29, 0
      %p207 = por %p205, %p206
      %s208 = ssub.s32 %s23, %s30
      %p209 = scmp.eq.s32.totalorder %s208, 0
      %s211 = sadd.s32 %s210, 1
      %s212 = scalar_select %p209, %s210, %s211
      %p215 = pneg %p209
      %p216 = scmp.eq.s32.totalorder %s23, 1
      %p217 = por %p215, %p216
      %p218 = scmp.ne.s32.totalorder %s210, %s213
      %p219 = scmp.eq.s32.totalorder %s23, 0
      %p220 = por %p218, %p219
      %p221 = scmp.ne.s32.totalorder %s210, %s213
      %p222 = scmp.eq.s32.totalorder %s28, 1
      %p223 = por %p221, %p222
      %p224 = scmp.ne.s32.totalorder %s213, %s214
      %p225 = scmp.eq.s32.totalorder %s28, 0
      %p226 = por %p224, %p225
      %p227 = scmp.ne.s32.totalorder %s213, %s214
      %p228 = scmp.eq.s32.totalorder %s29, 1
      %p229 = por %p227, %p228
      %p231 = scmp.ne.s32.totalorder %s214, %s230
      %p232 = scmp.eq.s32.totalorder %s29, 0
      %p233 = por %p231, %p232
      %s235 = sadd.s32 %s234, 1
      %p238 = scmp.eq.s32.totalorder %s23, 1
      %p239 = scmp.ne.s32.totalorder %s234, %s236
      %p240 = scmp.eq.s32.totalorder %s23, 0
      %p241 = por %p239, %p240
      %p242 = scmp.ne.s32.totalorder %s234, %s236
      %p243 = scmp.eq.s32.totalorder %s28, 1
      %p244 = por %p242, %p243
      %p245 = scmp.ne.s32.totalorder %s236, %s237
      %p246 = scmp.eq.s32.totalorder %s28, 0
      %p247 = por %p245, %p246
      %p248 = scmp.ne.s32.totalorder %s236, %s237
      %p249 = scmp.eq.s32.totalorder %s29, 1
      %p250 = por %p248, %p249
      %p252 = scmp.ne.s32.totalorder %s237, %s251
      %p253 = scmp.eq.s32.totalorder %s29, 0
      %p254 = por %p252, %p253
      %s256 = sadd.s32 %s255, 1
      %p259 = scmp.eq.s32.totalorder %s23, 1
      %p260 = scmp.ne.s32.totalorder %s255, %s257
      %p261 = scmp.eq.s32.totalorder %s23, 0
      %p262 = por %p260, %p261
      %p263 = scmp.ne.s32.totalorder %s255, %s257
      %p264 = scmp.eq.s32.totalorder %s28, 1
      %p265 = por %p263, %p264
      %p266 = scmp.ne.s32.totalorder %s257, %s258
      %p267 = scmp.eq.s32.totalorder %s28, 0
      %p268 = por %p266, %p267
      %p269 = scmp.ne.s32.totalorder %s257, %s258
      %p270 = scmp.eq.s32.totalorder %s29, 1
      %p271 = por %p269, %p270
      %p273 = scmp.ne.s32.totalorder %s258, %s272
      %p274 = scmp.eq.s32.totalorder %s29, 0
      %p275 = por %p273, %p274
      %p276 = scmp.le.s32.totalorder 1, %s23
      %p277 = scmp.lt.s32.totalorder %s23, 3
      %p278 = pnand %p276, %p277
      %p279 = pneg %p278
      // Predicated region
      $region9: #{tpu_custom_call.1} parent=5 // pred_check
        _
      $region10: #{tpu_custom_call.1} parent=5 // pred_check_branch
        %281 = sbr.rel (%p278) target = $region12
      $region11: #{tpu_custom_call.1} parent=5 // pred_region
        %s282 = ssub.s32 %s23, 1
        // Predicated region
        $region13: #{tpu_custom_call.1} parent=11 // pred_check
          %p283 = pneg %p44
        $region14: #{tpu_custom_call.1} parent=11 // pred_check_branch
          %285 = sbr.rel (%p283) target = $region16
        $region15: #{tpu_custom_call.1} parent=11 // pred_region
          %s287 = ssub.s32 512, 512
          %288 = vsyncadd [#allocation4], %s287
          %s289 = sshll.u32 [#allocation3], 4
          %s290 = int_to_ptr.vmem [resolvable:$true] %s289
          %295 = dma.hbm_to_vmem [thread:$0]  %s0, 512, %s290, [#allocation4], 128, 128, 8
        $region16: #{tpu_custom_call.1} parent=11 // pred_fallthru
          _
        // Predicated region
        $region17: #{tpu_custom_call.1} parent=11 // pred_check
          %p296 = pneg %p247
        $region18: #{tpu_custom_call.1} parent=11 // pred_check_branch
          %298 = sbr.rel (%p296) target = $region20
        $region19: #{tpu_custom_call.1} parent=11 // pred_region
          _
        $region20: #{tpu_custom_call.1} parent=11 // pred_fallthru
          _
      $region12: #{tpu_custom_call.1} parent=5 // pred_fallthru
        _
      %p299 = scmp.lt.s32.totalorder %s23, 2
      // Predicated region
      $region21: #{tpu_custom_call.1} parent=5 // pred_check
        %p300 = pneg %p299
      $region22: #{tpu_custom_call.1} parent=5 // pred_check_branch
        %302 = sbr.rel (%p300) target = $region24
      $region23: #{tpu_custom_call.1} parent=5 // pred_region
        // Predicated region
        $region25: #{tpu_custom_call.1} parent=23 // pred_check
          %p303 = pneg %p64
        $region26: #{tpu_custom_call.1} parent=23 // pred_check_branch
          %305 = sbr.rel (%p303) target = $region28
        $region27: #{tpu_custom_call.1} parent=23 // pred_region
          %s306 = sand.u32 %s23, 1
          %s307 = scalar_lea.sflag [#allocation7], %s306
          %s308 = sand.u32 %s54, 1
          %s309 = smul.addr %s308, 192
          %s310 = scalar_lea.vmem [#allocation6], %s309
          %s312 = ssub.s32 3072, 3072
          %313 = vsyncadd %s307, %s312
          %s314 = smul.addr %s23, 48
          %s315 = smul.addr %s314, 64
          %s316 = scalar_lea.hbm %s1, %s315
          %s317 = sshll.u32 %s310, 4
          %s318 = int_to_ptr.vmem [resolvable:$true] %s317
          %323 = dma.hbm_to_vmem [thread:$0]  %s316, 3072, %s318, %s307, 192, 192, 12
        $region28: #{tpu_custom_call.1} parent=23 // pred_fallthru
          _
        // Predicated region
        $region29: #{tpu_custom_call.1} parent=23 // pred_check
          %p324 = pneg %p90
        $region30: #{tpu_custom_call.1} parent=23 // pred_check_branch
          %326 = sbr.rel (%p324) target = $region32
        $region31: #{tpu_custom_call.1} parent=23 // pred_region
          %p327 = scmp.lt.s32.totalorder %s23, 1
          %s328 = scalar_select %p327, %s23, 1
          %s329 = smul.addr %s328, 3
          %s330 = scalar_lea.vmem %s2, %s329
        $region32: #{tpu_custom_call.1} parent=23 // pred_fallthru
          _
        // Predicated region
        $region33: #{tpu_custom_call.1} parent=23 // pred_check
          %p331 = pneg %p116
        $region34: #{tpu_custom_call.1} parent=23 // pred_check_branch
          %333 = sbr.rel (%p331) target = $region36
        $region35: #{tpu_custom_call.1} parent=23 // pred_region
          %s334 = sand.u32 %s23, 1
          %s335 = scalar_lea.sflag [#allocation7], %s334
          %s336 = sand.u32 %s106, 1
          %s337 = smul.addr %s336, 64
          %s338 = scalar_lea.vmem [#allocation8], %s337
          %s340 = ssub.s32 1024, 1024
          %341 = vsyncadd %s335, %s340
          %s342 = smul.addr %s23, 16
          %s343 = smul.addr %s342, 64
          %s344 = scalar_lea.hbm %s3, %s343
          %s345 = sshll.u32 %s338, 4
          %s346 = int_to_ptr.vmem [resolvable:$true] %s345
          %351 = dma.hbm_to_vmem [thread:$0]  %s344, 1024, %s346, %s335, 64, 64, 4
        $region36: #{tpu_custom_call.1} parent=23 // pred_fallthru
          _
        // Predicated region
        $region37: #{tpu_custom_call.1} parent=23 // pred_check
          %p352 = pneg %p142
        $region38: #{tpu_custom_call.1} parent=23 // pred_check_branch
          %354 = sbr.rel (%p352) target = $region40
        $region39: #{tpu_custom_call.1} parent=23 // pred_region
          %p355 = scmp.lt.s32.totalorder %s23, 1
          %s356 = scalar_select %p355, %s23, 1
          %s357 = smul.addr %s356, 8
          %s358 = scalar_lea.vmem %s4, %s357
        $region40: #{tpu_custom_call.1} parent=23 // pred_fallthru
          _
        // Predicated region
        $region41: #{tpu_custom_call.1} parent=23 // pred_check
          %p359 = pneg %p168
        $region42: #{tpu_custom_call.1} parent=23 // pred_check_branch
          %361 = sbr.rel (%p359) target = $region44
        $region43: #{tpu_custom_call.1} parent=23 // pred_region
          %s362 = sand.u32 %s23, 1
          %s363 = scalar_lea.sflag [#allocation10], %s362
          %s364 = sand.u32 %s158, 1
          %s365 = smul.addr %s364, 128
          %s366 = scalar_lea.vmem [#allocation9], %s365
          %s368 = ssub.s32 2048, 2048
          %369 = vsyncadd %s363, %s368
          %s370 = smul.addr %s23, 32
          %s371 = smul.addr %s370, 64
          %s372 = scalar_lea.hbm %s5, %s371
          %s373 = sshll.u32 %s366, 4
          %s374 = int_to_ptr.vmem [resolvable:$true] %s373
          %379 = dma.hbm_to_vmem [thread:$0]  %s372, 2048, %s374, %s363, 128, 128, 8
        $region44: #{tpu_custom_call.1} parent=23 // pred_fallthru
          _
        // Predicated region
        $region45: #{tpu_custom_call.1} parent=23 // pred_check
          %p380 = pneg %p194
        $region46: #{tpu_custom_call.1} parent=23 // pred_check_branch
          %382 = sbr.rel (%p380) target = $region48
        $region47: #{tpu_custom_call.1} parent=23 // pred_region
          %p383 = scmp.lt.s32.totalorder %s23, 1
          %s384 = scalar_select %p383, %s23, 1
          %s385 = smul.addr %s384, 2
          %s386 = scalar_lea.vmem %s6, %s385
        $region48: #{tpu_custom_call.1} parent=23 // pred_fallthru
          _
        // Predicated region
        $region49: #{tpu_custom_call.1} parent=23 // pred_check
          %p387 = pneg %p220
        $region50: #{tpu_custom_call.1} parent=23 // pred_check_branch
          %389 = sbr.rel (%p387) target = $region52
        $region51: #{tpu_custom_call.1} parent=23 // pred_region
          %s390 = sand.u32 %s23, 1
          %s391 = scalar_lea.sflag [#allocation10], %s390
          %s392 = sand.u32 %s210, 1
          %s393 = smul.addr %s392, 128
          %s394 = scalar_lea.vmem [#allocation11], %s393
          %s396 = ssub.s32 2048, 2048
          %397 = vsyncadd %s391, %s396
          %s398 = smul.addr %s23, 32
          %s399 = smul.addr %s398, 64
          %s400 = scalar_lea.hbm %s7, %s399
          %s401 = sshll.u32 %s394, 4
          %s402 = int_to_ptr.vmem [resolvable:$true] %s401
          %407 = dma.hbm_to_vmem [thread:$0]  %s400, 2048, %s402, %s391, 64, 64, 4
        $region52: #{tpu_custom_call.1} parent=23 // pred_fallthru
          _
      $region24: #{tpu_custom_call.1} parent=5 // pred_fallthru
        _
      %p408 = scmp.le.s32.totalorder 1, %s23
      %p409 = scmp.lt.s32.totalorder %s23, 3
      %p410 = pnand %p408, %p409
      %p411 = pneg %p410
      // Predicated region
      $region53: #{tpu_custom_call.1} parent=5 // pred_check
        _
      $region54: #{tpu_custom_call.1} parent=5 // pred_check_branch
        %413 = sbr.rel (%p410) target = $region56
      $region55: #{tpu_custom_call.1} parent=5 // pred_region
        %s414 = ssub.s32 %s23, 1
        // Predicated region
        $region57: #{tpu_custom_call.1} parent=55 // pred_check
          %p415 = pneg %p44
        $region58: #{tpu_custom_call.1} parent=55 // pred_check_branch
          %417 = sbr.rel (%p415) target = $region60
        $region59: #{tpu_custom_call.1} parent=55 // pred_region
          %418 = dma.done [#allocation4], 512
        $region60: #{tpu_custom_call.1} parent=55 // pred_fallthru
          _
        %s419 = sand.u32 %s28, 1
        %s420 = scalar_lea.sflag [#allocation7], %s419
        %s421 = sand.u32 %s57, 1
        %s422 = smul.addr %s421, 192
        %s423 = scalar_lea.vmem [#allocation6], %s422
        // Predicated region
        $region61: #{tpu_custom_call.1} parent=55 // pred_check
          %p424 = pneg %p70
        $region62: #{tpu_custom_call.1} parent=55 // pred_check_branch
          %426 = sbr.rel (%p424) target = $region64
        $region63: #{tpu_custom_call.1} parent=55 // pred_region
          %427 = dma.done %s420, 3072
        $region64: #{tpu_custom_call.1} parent=55 // pred_fallthru
          _
        %s428 = sand.u32 %s28, 1
        %s429 = scalar_lea.sflag [#allocation7], %s428
        %s430 = sand.u32 %s109, 1
        %s431 = smul.addr %s430, 64
        %s432 = scalar_lea.vmem [#allocation8], %s431
        // Predicated region
        $region65: #{tpu_custom_call.1} parent=55 // pred_check
          %p433 = pneg %p122
        $region66: #{tpu_custom_call.1} parent=55 // pred_check_branch
          %435 = sbr.rel (%p433) target = $region68
        $region67: #{tpu_custom_call.1} parent=55 // pred_region
          %436 = dma.done %s429, 1024
        $region68: #{tpu_custom_call.1} parent=55 // pred_fallthru
          _
        %s437 = sand.u32 %s28, 1
        %s438 = scalar_lea.sflag [#allocation10], %s437
        %s439 = sand.u32 %s161, 1
        %s440 = smul.addr %s439, 128
        %s441 = scalar_lea.vmem [#allocation9], %s440
        // Predicated region
        $region69: #{tpu_custom_call.1} parent=55 // pred_check
          %p442 = pneg %p174
        $region70: #{tpu_custom_call.1} parent=55 // pred_check_branch
          %444 = sbr.rel (%p442) target = $region72
        $region71: #{tpu_custom_call.1} parent=55 // pred_region
          %445 = dma.done %s438, 2048
        $region72: #{tpu_custom_call.1} parent=55 // pred_fallthru
          _
        %s446 = sand.u32 %s28, 1
        %s447 = scalar_lea.sflag [#allocation10], %s446
        %s448 = sand.u32 %s213, 1
        %s449 = smul.addr %s448, 128
        %s450 = scalar_lea.vmem [#allocation11], %s449
        // Predicated region
        $region73: #{tpu_custom_call.1} parent=55 // pred_check
          %p451 = pneg %p226
        $region74: #{tpu_custom_call.1} parent=55 // pred_check_branch
          %453 = sbr.rel (%p451) target = $region76
        $region75: #{tpu_custom_call.1} parent=55 // pred_region
          %454 = dma.done %s447, 2048
        $region76: #{tpu_custom_call.1} parent=55 // pred_fallthru
          _
        %p455 = pneg %p44
        %p456 = pneg %p41
        %s457 = sand.u32 %s28, 1
        %s458 = scalar_lea.sflag [#allocation7], %s457
        %s459 = sand.u32 %s57, 1
        %s460 = smul.addr %s459, 192
        %s461 = scalar_lea.vmem [#allocation6], %s460
        %p462 = pneg %p70
        %p463 = pneg %p67
        %p464 = scmp.lt.s32.totalorder %s28, 1
        %s465 = scalar_select %p464, %s28, 1
        %s466 = smul.addr %s465, 3
        %s467 = scalar_lea.vmem %s2, %s466
        %p468 = pneg %p96
        %p469 = pneg %p93
        %s470 = sand.u32 %s28, 1
        %s471 = scalar_lea.sflag [#allocation7], %s470
        %s472 = sand.u32 %s109, 1
        %s473 = smul.addr %s472, 64
        %s474 = scalar_lea.vmem [#allocation8], %s473
        %p475 = pneg %p122
        %p476 = pneg %p119
        %p477 = scmp.lt.s32.totalorder %s28, 1
        %s478 = scalar_select %p477, %s28, 1
        %s479 = smul.addr %s478, 8
        %s480 = scalar_lea.vmem %s4, %s479
        %p481 = pneg %p148
        %p482 = pneg %p145
        %s483 = sand.u32 %s28, 1
        %s484 = scalar_lea.sflag [#allocation10], %s483
        %s485 = sand.u32 %s161, 1
        %s486 = smul.addr %s485, 128
        %s487 = scalar_lea.vmem [#allocation9], %s486
        %p488 = pneg %p174
        %p489 = pneg %p171
        %p490 = scmp.lt.s32.totalorder %s28, 1
        %s491 = scalar_select %p490, %s28, 1
        %s492 = smul.addr %s491, 2
        %s493 = scalar_lea.vmem %s6, %s492
        %p494 = pneg %p200
        %p495 = pneg %p197
        %s496 = sand.u32 %s28, 1
        %s497 = scalar_lea.sflag [#allocation10], %s496
        %s498 = sand.u32 %s213, 1
        %s499 = smul.addr %s498, 128
        %s500 = scalar_lea.vmem [#allocation11], %s499
        %p501 = pneg %p226
        %p502 = pneg %p223
        %p503 = pneg %p247
        %p504 = pneg %p244
        %p505 = pneg %p268
        %p506 = pneg %p265
        %p507 = scmp.lt.s32.totalorder %s28, 1
        %s508 = scalar_select %p507, %s28, 1
        %s509 = smul.addr %s508, 3
        %s510 = scalar_lea.vmem %s2, %s509
        %p511 = scmp.lt.s32.totalorder %s28, 1
        %s512 = scalar_select %p511, %s28, 1
        %s513 = smul.addr %s512, 8
        %s514 = scalar_lea.vmem %s4, %s513
        %p515 = scmp.lt.s32.totalorder %s28, 1
        %s516 = scalar_select %p515, %s28, 1
        %s517 = smul.addr %s516, 2
        %s518 = scalar_lea.vmem %s6, %s517
        %p520 = scmp.eq.s32.totalorder %s28, 0
        // Predicated region
        $region77: #{tpu_custom_call.1} parent=55 // pred_check
          %p521 = pneg %p520
        $region78: #{tpu_custom_call.1} parent=55 // pred_check_branch
          %523 = sbr.rel (%p521) target = $region80
        $region79: #{tpu_custom_call.1} parent=55 // pred_region
          %v524 = vld [vmem:[#allocation3] sm:$0xff]
          %v525 = vld [vmem:[#allocation3 + $0x8] sm:$0xff]
          %v526 = vld [vmem:[#allocation3 + $0x10] sm:$0xff]
          %v527 = vld [vmem:[#allocation3 + $0x18] sm:$0xff]
          %528 = vst [vmem:[#allocation2] sm:$0xff] %v524
          %529 = vst [vmem:[#allocation2 + $0x8] sm:$0xff] %v525
          %530 = vst [vmem:[#allocation2 + $0x10] sm:$0xff] %v526
          %531 = vst [vmem:[#allocation2 + $0x18] sm:$0xff] %v527
        $region80: #{tpu_custom_call.1} parent=55 // pred_fallthru
          _
        %v532 = vld [vmem:[#allocation2] sm:$0xff]
        %v533 = vld [vmem:[#allocation2 + $0x8] sm:$0xff]
        %v534 = vld [vmem:[#allocation2 + $0x10] sm:$0xff]
        %v535 = vld [vmem:[#allocation2 + $0x18] sm:$0xff]
        %v536 = vld [vmem:[%s514] sm:$0x1]
        %v537 = vld [vmem:[%s514 + $0x1] sm:$0x1]
        %v538 = vld [vmem:[%s514 + $0x2] sm:$0x1]
        %v539 = vld [vmem:[%s514 + $0x3] sm:$0x1]
        %v540 = vld [vmem:[%s514 + $0x4] sm:$0x1]
        %v541 = vld [vmem:[%s514 + $0x5] sm:$0x1]
        %542 = vadd.xlane.f32.xlu0 %v532
        %v543 = vpop.xlane.xlu0 %542
        %544 = vadd.xlane.f32.xlu0 %v533
        %v545 = vpop.xlane.xlu0 %544
        %546 = vadd.xlane.f32.xlu0 %v534
        %v547 = vpop.xlane.xlu0 %546
        %548 = vadd.xlane.f32.xlu0 %v535
        %v549 = vpop.xlane.xlu0 %548
        %v550 = vrcp.pop 128.0
        %v551 = vmul.f32 %v543, %v550
        %v552 = vmul.f32 %v545, %v550
        %v553 = vmul.f32 %v547, %v550
        %v554 = vmul.f32 %v549, %v550
        %v555 = vsub.f32 %v532, %v551
        %v556 = vsub.f32 %v533, %v552
        %v557 = vsub.f32 %v534, %v553
        %v558 = vsub.f32 %v535, %v554
        %v559 = vmul.f32 %v555, %v555
        %v560 = vmul.f32 %v556, %v556
        %v561 = vmul.f32 %v557, %v557
        %v562 = vmul.f32 %v558, %v558
        %563 = vadd.xlane.f32.xlu0 %v559
        %v564 = vpop.xlane.xlu0 %563
        %565 = vadd.xlane.f32.xlu0 %v560
        %v566 = vpop.xlane.xlu0 %565
        %567 = vadd.xlane.f32.xlu0 %v561
        %v568 = vpop.xlane.xlu0 %567
        %569 = vadd.xlane.f32.xlu0 %v562
        %v570 = vpop.xlane.xlu0 %569
        %v571 = vmul.f32 %v564, %v550
        %v572 = vmul.f32 %v566, %v550
        %v573 = vmul.f32 %v568, %v550
        %v574 = vmul.f32 %v570, %v550
        %v575 = vadd.f32 %v571, 1e-05
        %v576 = vadd.f32 %v572, 1e-05
        %v577 = vadd.f32 %v573, 1e-05
        %v578 = vadd.f32 %v574, 1e-05
        %v579 = vrsqrt.pop %v575
        %v580 = vrsqrt.pop %v576
        %v581 = vrsqrt.pop %v577
        %v582 = vrsqrt.pop %v578
        %v583 = vmul.f32 %v555, %v579
        %v584 = vmul.f32 %v556, %v580
        %v585 = vmul.f32 %v557, %v581
        %v586 = vmul.f32 %v558, %v582
        %v587 = vlaneseq
        %v588 = vshrl.u32 %v587, 7
        %v589 = vsub.s32 0, %v588
        %v590 = vrot.slane %v536, %v589
        %v591 = vmul.f32 %v583, %v590
        %v592 = vmul.f32 %v584, %v590
        %v593 = vmul.f32 %v585, %v590
        %v594 = vmul.f32 %v586, %v590
        %v595 = vlaneseq
        %v596 = vshrl.u32 %v595, 7
        %v597 = vsub.s32 0, %v596
        %v598 = vrot.slane %v537, %v597
        %v599 = vadd.f32 %v591, %v598
        %v600 = vadd.f32 %v592, %v598
        %v601 = vadd.f32 %v593, %v598
        %v602 = vadd.f32 %v594, %v598
        %v603 = vpack.c.bf16 %v600, %v599
        %v604 = vpack.c.bf16 %v602, %v601
        %v605 = vld [vmem:[%s423] sm:$0xff]
        %v606 = vld [vmem:[%s423 + $0x8] sm:$0xf]
        %v607 = vld [vmem:[%s423 + $0xc] sm:$0xff]
        %v608 = vld [vmem:[%s423 + $0x14] sm:$0xf]
        %v609 = vld [vmem:[%s423 + $0x18] sm:$0xff]
        %v610 = vld [vmem:[%s423 + $0x20] sm:$0xf]
        %v611 = vld [vmem:[%s423 + $0x24] sm:$0xff]
        %v612 = vld [vmem:[%s423 + $0x2c] sm:$0xf]
        %v613 = vld [vmem:[%s423 + $0x30] sm:$0xff]
        %v614 = vld [vmem:[%s423 + $0x38] sm:$0xf]
        %v615 = vld [vmem:[%s423 + $0x3c] sm:$0xff]
        %v616 = vld [vmem:[%s423 + $0x44] sm:$0xf]
        %v617 = vld [vmem:[%s423 + $0x48] sm:$0xff]
        %v618 = vld [vmem:[%s423 + $0x50] sm:$0xf]
        %v619 = vld [vmem:[%s423 + $0x54] sm:$0xff]
        %v620 = vld [vmem:[%s423 + $0x5c] sm:$0xf]
        %v621 = vld [vmem:[%s423 + $0x60] sm:$0xff]
        %v622 = vld [vmem:[%s423 + $0x68] sm:$0xf]
        %v623 = vld [vmem:[%s423 + $0x6c] sm:$0xff]
        %v624 = vld [vmem:[%s423 + $0x74] sm:$0xf]
        %v625 = vld [vmem:[%s423 + $0x78] sm:$0xff]
        %v626 = vld [vmem:[%s423 + $0x80] sm:$0xf]
        %v627 = vld [vmem:[%s423 + $0x84] sm:$0xff]
        %v628 = vld [vmem:[%s423 + $0x8c] sm:$0xf]
        %v629 = vld [vmem:[%s423 + $0x90] sm:$0xff]
        %v630 = vld [vmem:[%s423 + $0x98] sm:$0xf]
        %v631 = vld [vmem:[%s423 + $0x9c] sm:$0xff]
        %v632 = vld [vmem:[%s423 + $0xa4] sm:$0xf]
        %v633 = vld [vmem:[%s423 + $0xa8] sm:$0xff]
        %v634 = vld [vmem:[%s423 + $0xb0] sm:$0xf]
        %v635 = vld [vmem:[%s423 + $0xb4] sm:$0xff]
        %v636 = vld [vmem:[%s423 + $0xbc] sm:$0xf]
        %v637 = vld [vmem:[%s510] sm:$0x7]
        %v639 = vlaneseq
        %v640 = vshrl.u32 %v639, 7
        %v641 = vsub.s32 0, %v640
        %v642 = vrot.slane %v637, %v641
        %v643 = vlaneseq
        %v644 = vshrl.u32 %v643, 7
        %v645 = vsub.s32 1, %v644
        %v646 = vrot.slane %v637, %v645
        %v647 = vlaneseq
        %v648 = vshrl.u32 %v647, 7
        %v649 = vsub.s32 2, %v648
        %v650 = vrot.slane %v637, %v649
        %v686 = vunpack.c.l.b16 %v605
        %v687 = vunpack.c.h.b16 %v605
        %v688 = vunpack.c.l.b16 %v606
        %v689 = vunpack.c.l.b16 %v607
        %v690 = vunpack.c.h.b16 %v607
        %v691 = vunpack.c.l.b16 %v608
        %v692 = vunpack.c.l.b16 %v609
        %v693 = vunpack.c.h.b16 %v609
        %v694 = vunpack.c.l.b16 %v610
        %v695 = vunpack.c.l.b16 %v611
        %v696 = vunpack.c.h.b16 %v611
        %v697 = vunpack.c.l.b16 %v612
        %v698 = vunpack.c.l.b16 %v613
        %v699 = vunpack.c.h.b16 %v613
        %v700 = vunpack.c.l.b16 %v614
        %v701 = vunpack.c.l.b16 %v615
        %v702 = vunpack.c.h.b16 %v615
        %v703 = vunpack.c.l.b16 %v616
        %v704 = vunpack.c.l.b16 %v617
        %v705 = vunpack.c.h.b16 %v617
        %v706 = vunpack.c.l.b16 %v618
        %v707 = vunpack.c.l.b16 %v619
        %v708 = vunpack.c.h.b16 %v619
        %v709 = vunpack.c.l.b16 %v620
        %v710 = vunpack.c.l.b16 %v621
        %v711 = vunpack.c.h.b16 %v621
        %v712 = vunpack.c.l.b16 %v622
        %v713 = vunpack.c.l.b16 %v623
        %v714 = vunpack.c.h.b16 %v623
        %v715 = vunpack.c.l.b16 %v624
        %v716 = vunpack.c.l.b16 %v625
        %v717 = vunpack.c.h.b16 %v625
        %v718 = vunpack.c.l.b16 %v626
        %v719 = vunpack.c.l.b16 %v627
        %v720 = vunpack.c.h.b16 %v627
        %v721 = vunpack.c.l.b16 %v628
        %v722 = vunpack.c.l.b16 %v629
        %v723 = vunpack.c.h.b16 %v629
        %v724 = vunpack.c.l.b16 %v630
        %v725 = vunpack.c.l.b16 %v631
        %v726 = vunpack.c.h.b16 %v631
        %v727 = vunpack.c.l.b16 %v632
        %v728 = vunpack.c.l.b16 %v633
        %v729 = vunpack.c.h.b16 %v633
        %v730 = vunpack.c.l.b16 %v634
        %v731 = vunpack.c.l.b16 %v635
        %v732 = vunpack.c.h.b16 %v635
        %v733 = vunpack.c.l.b16 %v636
        %v734 = vpack.c.b16 %v689, %v686
        %v735 = vpack.c.b16 %v690, %v687
        %v736 = vpack.c.b16 %v691, %v688
        %v737 = vpack.c.b16 %v695, %v692
        %v738 = vpack.c.b16 %v696, %v693
        %v739 = vpack.c.b16 %v697, %v694
        %v740 = vpack.c.b16 %v701, %v698
        %v741 = vpack.c.b16 %v702, %v699
        %v742 = vpack.c.b16 %v703, %v700
        %v743 = vpack.c.b16 %v707, %v704
        %v744 = vpack.c.b16 %v708, %v705
        %v745 = vpack.c.b16 %v709, %v706
        %v746 = vpack.c.b16 %v713, %v710
        %v747 = vpack.c.b16 %v714, %v711
        %v748 = vpack.c.b16 %v715, %v712
        %v749 = vpack.c.b16 %v719, %v716
        %v750 = vpack.c.b16 %v720, %v717
        %v751 = vpack.c.b16 %v721, %v718
        %v752 = vpack.c.b16 %v725, %v722
        %v753 = vpack.c.b16 %v726, %v723
        %v754 = vpack.c.b16 %v727, %v724
        %v755 = vpack.c.b16 %v731, %v728
        %v756 = vpack.c.b16 %v732, %v729
        %v757 = vpack.c.b16 %v733, %v730
        %782 = vmatprep.subr.bf16.mxu0 %v756
        %783 = vmatpush1.bf16.msra.mxu0 %v755
        %784 = vmatprep.subr.bf16.mxu0 %v753
        %785 = vmatpush1.bf16.msra.mxu0 %v752
        %786 = vmatprep.subr.bf16.mxu0 %v750
        %787 = vmatpush1.bf16.msra.mxu0 %v749
        %788 = vmatprep.subr.bf16.mxu0 %v747
        %789 = vmatpush1.bf16.msra.mxu0 %v746
        %790 = vmatprep.subr.bf16.mxu0 %v744
        %791 = vmatpush1.bf16.msra.mxu0 %v743
        %792 = vmatprep.subr.bf16.mxu0 %v741
        %793 = vmatpush1.bf16.msra.mxu0 %v740
        %794 = vmatprep.subr.bf16.mxu0 %v738
        %795 = vmatpush1.bf16.msra.mxu0 %v737
        %796 = vmatprep.subr.bf16.mxu0 %v735
        %797 = vmatpush1.bf16.msra.mxu0 %v734
        %798 = vmatprep.subr.bf16.mxu0 0
        %799 = vmatpush2.bf16.msra.mxu0 0
        %800 = vmatprep.subr.bf16.mxu0 0
        %801 = vmatpush2.bf16.msra.mxu0 0
        %802 = vmatprep.subr.bf16.mxu0 0
        %803 = vmatpush2.bf16.msra.mxu0 0
        %804 = vmatprep.subr.bf16.mxu0 0
        %805 = vmatpush2.bf16.msra.mxu0 0
        %806 = vmatprep.subr.bf16.mxu0 0
        %807 = vmatpush2.bf16.msra.mxu0 0
        %808 = vmatprep.subr.bf16.mxu0 0
        %809 = vmatpush2.bf16.msra.mxu0 0
        %810 = vmatprep.subr.bf16.mxu0 0
        %811 = vmatpush2.bf16.msra.mxu0 0
        %812 = vmatprep.subr.bf16.mxu0 0
        %813 = vmatpush2.bf16.msra.mxu0 0
        %814 = vmatprep.mubr.bf16.mxu0 0
        %815 = vmatmul.mubr.bf16.gmra.mxu0 %v603
        %v816 = vpop.f32.mrf.mxu0
        %v817 = vadd.f32 %v642, %v816
        %v818 = vpop.f32.mrf.mxu0
        %v819 = vadd.f32 %v646, %v818
        %v820 = vpop.f32.mrf.mxu0
        %v821 = vadd.f32 %v642, %v820
        %v822 = vpop.f32.mrf.mxu0
        %v823 = vadd.f32 %v646, %v822
        %824 = vmatprep.mubr.bf16.mxu0 0
        %825 = vmatmul.mubr.bf16.gmra.mxu0 %v604
        %v826 = vpop.f32.mrf.mxu0
        %v827 = vadd.f32 %v642, %v826
        %v828 = vpop.f32.mrf.mxu0
        %v829 = vadd.f32 %v646, %v828
        %v830 = vpop.f32.mrf.mxu0
        %v831 = vadd.f32 %v642, %v830
        %v832 = vpop.f32.mrf.mxu0
        %v833 = vadd.f32 %v646, %v832
        %834 = vdwg.mxu0
        %835 = vmatprep.subr.bf16.mxu0 0
        %836 = vmatpush1.bf16.msra.mxu0 %v757
        %837 = vmatprep.subr.bf16.mxu0 0
        %838 = vmatpush1.bf16.msra.mxu0 %v754
        %839 = vmatprep.subr.bf16.mxu0 0
        %840 = vmatpush1.bf16.msra.mxu0 %v751
        %841 = vmatprep.subr.bf16.mxu0 0
        %842 = vmatpush1.bf16.msra.mxu0 %v748
        %843 = vmatprep.subr.bf16.mxu0 0
        %844 = vmatpush1.bf16.msra.mxu0 %v745
        %845 = vmatprep.subr.bf16.mxu0 0
        %846 = vmatpush1.bf16.msra.mxu0 %v742
        %847 = vmatprep.subr.bf16.mxu0 0
        %848 = vmatpush1.bf16.msra.mxu0 %v739
        %849 = vmatprep.subr.bf16.mxu0 0
        %850 = vmatpush1.bf16.msra.mxu0 %v736
        %851 = vmatprep.subr.bf16.mxu0 0
        %852 = vmatpush2.bf16.msra.mxu0 0
        %853 = vmatprep.subr.bf16.mxu0 0
        %854 = vmatpush2.bf16.msra.mxu0 0
        %855 = vmatprep.subr.bf16.mxu0 0
        %856 = vmatpush2.bf16.msra.mxu0 0
        %857 = vmatprep.subr.bf16.mxu0 0
        %858 = vmatpush2.bf16.msra.mxu0 0
        %859 = vmatprep.subr.bf16.mxu0 0
        %860 = vmatpush2.bf16.msra.mxu0 0
        %861 = vmatprep.subr.bf16.mxu0 0
        %862 = vmatpush2.bf16.msra.mxu0 0
        %863 = vmatprep.subr.bf16.mxu0 0
        %864 = vmatpush2.bf16.msra.mxu0 0
        %865 = vmatprep.subr.bf16.mxu0 0
        %866 = vmatpush2.bf16.msra.mxu0 0
        %867 = vmatprep.mubr.bf16.mxu0 0
        %868 = vmatmul.mubr.bf16.gmra.mxu0 %v603
        %v869 = vpop.f32.mrf.mxu0
        %v870 = vadd.f32 %v650, %v869
        %v871 = vpop.f32.mrf.mxu0
        %v872 = vpop.f32.mrf.mxu0
        %v873 = vadd.f32 %v650, %v872
        %v874 = vpop.f32.mrf.mxu0
        %875 = vmatprep.mubr.bf16.mxu0 0
        %876 = vmatmul.mubr.bf16.gmra.mxu0 %v604
        %v877 = vpop.f32.mrf.mxu0
        %v878 = vadd.f32 %v650, %v877
        %v879 = vpop.f32.mrf.mxu0
        %v880 = vpop.f32.mrf.mxu0
        %v881 = vadd.f32 %v650, %v880
        %v882 = vpop.f32.mrf.mxu0
        %883 = vdwg.mxu0
        %v884 = vpack.c.bf16 %v821, %v817
        %v885 = vpack.c.bf16 %v831, %v827
        %v886 = vpack.c.bf16 %v823, %v819
        %v887 = vpack.c.bf16 %v833, %v829
        %888 = vmatprep.subr.bf16.mxu0 0
        %889 = vmatpush1.bf16.xpose.msra.mxu0 0
        %890 = vmatprep.subr.bf16.mxu0 0
        %891 = vmatpush1.bf16.xpose.msra.mxu0 0
        %892 = vmatprep.subr.bf16.mxu0 0
        %893 = vmatpush1.bf16.xpose.msra.mxu0 0
        %894 = vmatprep.subr.bf16.mxu0 0
        %895 = vmatpush1.bf16.xpose.msra.mxu0 0
        %896 = vmatprep.subr.bf16.mxu0 0
        %897 = vmatpush1.bf16.xpose.msra.mxu0 0
        %898 = vmatprep.subr.bf16.mxu0 0
        %899 = vmatpush1.bf16.xpose.msra.mxu0 0
        %900 = vmatprep.subr.bf16.mxu0 0
        %901 = vmatpush1.bf16.xpose.msra.mxu0 0
        %902 = vmatprep.subr.bf16.mxu0 0
        %903 = vmatpush1.bf16.xpose.msra.mxu0 %v886
        %904 = vmatprep.subr.bf16.mxu0 0
        %905 = vmatpush2.bf16.xpose.msra.mxu0 0
        %906 = vmatprep.subr.bf16.mxu0 0
        %907 = vmatpush2.bf16.xpose.msra.mxu0 0
        %908 = vmatprep.subr.bf16.mxu0 0
        %909 = vmatpush2.bf16.xpose.msra.mxu0 0
        %910 = vmatprep.subr.bf16.mxu0 0
        %911 = vmatpush2.bf16.xpose.msra.mxu0 0
        %912 = vmatprep.subr.bf16.mxu0 0
        %913 = vmatpush2.bf16.xpose.msra.mxu0 0
        %914 = vmatprep.subr.bf16.mxu0 0
        %915 = vmatpush2.bf16.xpose.msra.mxu0 0
        %916 = vmatprep.subr.bf16.mxu0 0
        %917 = vmatpush2.bf16.xpose.msra.mxu0 0
        %918 = vmatprep.subr.bf16.mxu0 0
        %919 = vmatpush2.bf16.xpose.msra.mxu0 0
        %920 = vmatprep.mubr.bf16.mxu0 0
        %921 = vmatmul.mubr.bf16.gmra.mxu0 %v884
        %v922 = vpop.f32.mrf.mxu0
        %v923 = vadd.f32 0.0, %v922
        %v924 = vpop.f32.mrf.mxu0
        %v925 = vpop.f32.mrf.mxu0
        %v926 = vadd.f32 0.0, %v925
        %v927 = vpop.f32.mrf.mxu0
        %928 = vdwg.mxu0
        %929 = vmatprep.subr.bf16.mxu0 0
        %930 = vmatpush1.bf16.xpose.msra.mxu0 0
        %931 = vmatprep.subr.bf16.mxu0 0
        %932 = vmatpush1.bf16.xpose.msra.mxu0 0
        %933 = vmatprep.subr.bf16.mxu0 0
        %934 = vmatpush1.bf16.xpose.msra.mxu0 0
        %935 = vmatprep.subr.bf16.mxu0 0
        %936 = vmatpush1.bf16.xpose.msra.mxu0 0
        %937 = vmatprep.subr.bf16.mxu0 0
        %938 = vmatpush1.bf16.xpose.msra.mxu0 0
        %939 = vmatprep.subr.bf16.mxu0 0
        %940 = vmatpush1.bf16.xpose.msra.mxu0 0
        %941 = vmatprep.subr.bf16.mxu0 0
        %942 = vmatpush1.bf16.xpose.msra.mxu0 0
        %943 = vmatprep.subr.bf16.mxu0 0
        %944 = vmatpush1.bf16.xpose.msra.mxu0 %v887
        %945 = vmatprep.subr.bf16.mxu0 0
        %946 = vmatpush2.bf16.xpose.msra.mxu0 0
        %947 = vmatprep.subr.bf16.mxu0 0
        %948 = vmatpush2.bf16.xpose.msra.mxu0 0
        %949 = vmatprep.subr.bf16.mxu0 0
        %950 = vmatpush2.bf16.xpose.msra.mxu0 0
        %951 = vmatprep.subr.bf16.mxu0 0
        %952 = vmatpush2.bf16.xpose.msra.mxu0 0
        %953 = vmatprep.subr.bf16.mxu0 0
        %954 = vmatpush2.bf16.xpose.msra.mxu0 0
        %955 = vmatprep.subr.bf16.mxu0 0
        %956 = vmatpush2.bf16.xpose.msra.mxu0 0
        %957 = vmatprep.subr.bf16.mxu0 0
        %958 = vmatpush2.bf16.xpose.msra.mxu0 0
        %959 = vmatprep.subr.bf16.mxu0 0
        %960 = vmatpush2.bf16.xpose.msra.mxu0 0
        %961 = vmatprep.mubr.bf16.mxu0 0
        %962 = vmatmul.mubr.bf16.gmra.mxu0 %v885
        %v963 = vpop.f32.mrf.mxu0
        %v964 = vadd.f32 0.0, %v963
        %v965 = vpop.f32.mrf.mxu0
        %v966 = vpop.f32.mrf.mxu0
        %v967 = vadd.f32 0.0, %v966
        %v968 = vpop.f32.mrf.mxu0
        %969 = vdwg.mxu0
        %v970 = vmul.f32 %v923, 0.088388346
        %v971 = vmul.f32 %v926, 0.088388346
        %v972 = vmul.f32 %v964, 0.088388346
        %v973 = vmul.f32 %v967, 0.088388346
        %v974 = vlaneseq
        %v975 = vand.u32 %v974, 127
        %vm976 = vcmp.lt.s32.totalorder %v975, 9
        %v977 = vsel %vm976, %v970, -1e+30
        %v978 = vsel %vm976, %v971, -1e+30
        %v979 = vsel %vm976, %v972, -1e+30
        %v980 = vsel %vm976, %v973, -1e+30
        %vm981 = vcmask 130048
        %v982 = vsel %vm981, %v977, -inf
        %983 = vmax.xlane.f32.xlu0 %v982
        %v984 = vpop.xlane.xlu0 %983
        %v985 = vsel %vm981, %v978, -inf
        %986 = vmax.xlane.f32.xlu0 %v985
        %v987 = vpop.xlane.xlu0 %986
        %v988 = vsel %vm981, %v979, -inf
        %989 = vmax.xlane.f32.xlu0 %v988
        %v990 = vpop.xlane.xlu0 %989
        %v991 = vsel %vm981, %v980, -inf
        %992 = vmax.xlane.f32.xlu0 %v991
        %v993 = vpop.xlane.xlu0 %992
        %v994 = vsub.f32 %v977, %v984
        %v995 = vsub.f32 %v978, %v987
        %v996 = vsub.f32 %v979, %v990
        %v997 = vsub.f32 %v980, %v993
        %v998 = vmul.f32 %v994, 1.442695
        %v999 = vpow.pop %v998
        %v1000 = vmul.f32 %v995, 1.442695
        %v1001 = vpow.pop %v1000
        %v1002 = vmul.f32 %v996, 1.442695
        %v1003 = vpow.pop %v1002
        %v1004 = vmul.f32 %v997, 1.442695
        %v1005 = vpow.pop %v1004
        %v1006 = vsel %vm981, %v999, 0.0
        %1007 = vadd.xlane.f32.xlu0 %v1006
        %v1008 = vpop.xlane.xlu0 %1007
        %v1009 = vsel %vm981, %v1001, 0.0
        %1010 = vadd.xlane.f32.xlu0 %v1009
        %v1011 = vpop.xlane.xlu0 %1010
        %v1012 = vsel %vm981, %v1003, 0.0
        %1013 = vadd.xlane.f32.xlu0 %v1012
        %v1014 = vpop.xlane.xlu0 %1013
        %v1015 = vsel %vm981, %v1005, 0.0
        %1016 = vadd.xlane.f32.xlu0 %v1015
        %v1017 = vpop.xlane.xlu0 %1016
        %v1018 = vrcp.pop %v1008
        %v1019 = vrcp.pop %v1011
        %v1020 = vrcp.pop %v1014
        %v1021 = vrcp.pop %v1017
        %v1022 = vmul.f32 %v999, %v1018
        %v1023 = vmul.f32 %v1001, %v1019
        %v1024 = vmul.f32 %v1003, %v1020
        %v1025 = vmul.f32 %v1005, %v1021
        %v1026 = vpack.c.bf16 %v1023, %v1022
        %v1027 = vpack.c.bf16 %v1025, %v1024
        %v1028 = vpack.c.bf16 %v873, %v870
        %v1029 = vpack.c.bf16 %v881, %v878
        %v1031 = vsel %vm981, %v1026, 0
        %1033 = vmatprep.subr.bf16.mxu0 0
        %1034 = vmatpush1.bf16.msra.mxu0 0
        %1035 = vmatprep.subr.bf16.mxu0 0
        %1036 = vmatpush1.bf16.msra.mxu0 0
        %1037 = vmatprep.subr.bf16.mxu0 0
        %1038 = vmatpush1.bf16.msra.mxu0 0
        %1039 = vmatprep.subr.bf16.mxu0 0
        %1040 = vmatpush1.bf16.msra.mxu0 0
        %1041 = vmatprep.subr.bf16.mxu0 0
        %1042 = vmatpush1.bf16.msra.mxu0 0
        %1043 = vmatprep.subr.bf16.mxu0 0
        %1044 = vmatpush1.bf16.msra.mxu0 0
        %1045 = vmatprep.subr.bf16.mxu0 0
        %1046 = vmatpush1.bf16.msra.mxu0 0
        %1047 = vmatprep.subr.bf16.mxu0 0
        %1048 = vmatpush1.bf16.msra.mxu0 %v1028
        %1049 = vmatprep.subr.bf16.mxu0 0
        %1050 = vmatpush2.bf16.msra.mxu0 0
        %1051 = vmatprep.subr.bf16.mxu0 0
        %1052 = vmatpush2.bf16.msra.mxu0 0
        %1053 = vmatprep.subr.bf16.mxu0 0
        %1054 = vmatpush2.bf16.msra.mxu0 0
        %1055 = vmatprep.subr.bf16.mxu0 0
        %1056 = vmatpush2.bf16.msra.mxu0 0
        %1057 = vmatprep.subr.bf16.mxu0 0
        %1058 = vmatpush2.bf16.msra.mxu0 0
        %1059 = vmatprep.subr.bf16.mxu0 0
        %1060 = vmatpush2.bf16.msra.mxu0 0
        %1061 = vmatprep.subr.bf16.mxu0 0
        %1062 = vmatpush2.bf16.msra.mxu0 0
        %1063 = vmatprep.subr.bf16.mxu0 0
        %1064 = vmatpush2.bf16.msra.mxu0 0
        %1065 = vmatprep.mubr.bf16.mxu0 0
        %1066 = vmatmul.mubr.bf16.gmra.mxu0 %v1031
        %v1067 = vpop.f32.mrf.mxu0
        %v1068 = vadd.f32 0.0, %v1067
        %v1069 = vpop.f32.mrf.mxu0
        %v1070 = vpop.f32.mrf.mxu0
        %v1071 = vadd.f32 0.0, %v1070
        %v1072 = vpop.f32.mrf.mxu0
        %1073 = vdwg.mxu0
        %v1075 = vsel %vm981, %v1027, 0
        %1077 = vmatprep.subr.bf16.mxu0 0
        %1078 = vmatpush1.bf16.msra.mxu0 0
        %1079 = vmatprep.subr.bf16.mxu0 0
        %1080 = vmatpush1.bf16.msra.mxu0 0
        %1081 = vmatprep.subr.bf16.mxu0 0
        %1082 = vmatpush1.bf16.msra.mxu0 0
        %1083 = vmatprep.subr.bf16.mxu0 0
        %1084 = vmatpush1.bf16.msra.mxu0 0
        %1085 = vmatprep.subr.bf16.mxu0 0
        %1086 = vmatpush1.bf16.msra.mxu0 0
        %1087 = vmatprep.subr.bf16.mxu0 0
        %1088 = vmatpush1.bf16.msra.mxu0 0
        %1089 = vmatprep.subr.bf16.mxu0 0
        %1090 = vmatpush1.bf16.msra.mxu0 0
        %1091 = vmatprep.subr.bf16.mxu0 0
        %1092 = vmatpush1.bf16.msra.mxu0 %v1029
        %1093 = vmatprep.subr.bf16.mxu0 0
        %1094 = vmatpush2.bf16.msra.mxu0 0
        %1095 = vmatprep.subr.bf16.mxu0 0
        %1096 = vmatpush2.bf16.msra.mxu0 0
        %1097 = vmatprep.subr.bf16.mxu0 0
        %1098 = vmatpush2.bf16.msra.mxu0 0
        %1099 = vmatprep.subr.bf16.mxu0 0
        %1100 = vmatpush2.bf16.msra.mxu0 0
        %1101 = vmatprep.subr.bf16.mxu0 0
        %1102 = vmatpush2.bf16.msra.mxu0 0
        %1103 = vmatprep.subr.bf16.mxu0 0
        %1104 = vmatpush2.bf16.msra.mxu0 0
        %1105 = vmatprep.subr.bf16.mxu0 0
        %1106 = vmatpush2.bf16.msra.mxu0 0
        %1107 = vmatprep.subr.bf16.mxu0 0
        %1108 = vmatpush2.bf16.msra.mxu0 0
        %1109 = vmatprep.mubr.bf16.mxu0 0
        %1110 = vmatmul.mubr.bf16.gmra.mxu0 %v1075
        %v1111 = vpop.f32.mrf.mxu0
        %v1112 = vadd.f32 0.0, %v1111
        %v1113 = vpop.f32.mrf.mxu0
        %v1114 = vpop.f32.mrf.mxu0
        %v1115 = vadd.f32 0.0, %v1114
        %v1116 = vpop.f32.mrf.mxu0
        %1117 = vdwg.mxu0
        %v1118 = vpack.c.bf16 %v1071, %v1068
        %v1119 = vpack.c.bf16 %v1115, %v1112
        %v1120 = vld [vmem:[%s432] sm:$0xf]
        %v1121 = vld [vmem:[%s432 + $0x4] sm:$0xf]
        %v1122 = vld [vmem:[%s432 + $0x8] sm:$0xf]
        %v1123 = vld [vmem:[%s432 + $0xc] sm:$0xf]
        %v1124 = vld [vmem:[%s432 + $0x10] sm:$0xf]
        %v1125 = vld [vmem:[%s432 + $0x14] sm:$0xf]
        %v1126 = vld [vmem:[%s432 + $0x18] sm:$0xf]
        %v1127 = vld [vmem:[%s432 + $0x1c] sm:$0xf]
        %v1128 = vld [vmem:[%s432 + $0x20] sm:$0xf]
        %v1129 = vld [vmem:[%s432 + $0x24] sm:$0xf]
        %v1130 = vld [vmem:[%s432 + $0x28] sm:$0xf]
        %v1131 = vld [vmem:[%s432 + $0x2c] sm:$0xf]
        %v1132 = vld [vmem:[%s432 + $0x30] sm:$0xf]
        %v1133 = vld [vmem:[%s432 + $0x34] sm:$0xf]
        %v1134 = vld [vmem:[%s432 + $0x38] sm:$0xf]
        %v1135 = vld [vmem:[%s432 + $0x3c] sm:$0xf]
        %v1136 = vlaneseq
        %v1137 = vshrl.u32 %v1136, 7
        %v1138 = vsub.s32 0, %v1137
        %v1139 = vrot.slane %v540, %v1138
        %v1156 = vunpack.c.l.b16 %v1120
        %v1157 = vunpack.c.l.b16 %v1121
        %v1158 = vunpack.c.l.b16 %v1122
        %v1159 = vunpack.c.l.b16 %v1123
        %v1160 = vunpack.c.l.b16 %v1124
        %v1161 = vunpack.c.l.b16 %v1125
        %v1162 = vunpack.c.l.b16 %v1126
        %v1163 = vunpack.c.l.b16 %v1127
        %v1164 = vunpack.c.l.b16 %v1128
        %v1165 = vunpack.c.l.b16 %v1129
        %v1166 = vunpack.c.l.b16 %v1130
        %v1167 = vunpack.c.l.b16 %v1131
        %v1168 = vunpack.c.l.b16 %v1132
        %v1169 = vunpack.c.l.b16 %v1133
        %v1170 = vunpack.c.l.b16 %v1134
        %v1171 = vunpack.c.l.b16 %v1135
        %v1172 = vpack.c.b16 %v1157, %v1156
        %v1173 = vpack.c.b16 %v1159, %v1158
        %v1174 = vpack.c.b16 %v1161, %v1160
        %v1175 = vpack.c.b16 %v1163, %v1162
        %v1176 = vpack.c.b16 %v1165, %v1164
        %v1177 = vpack.c.b16 %v1167, %v1166
        %v1178 = vpack.c.b16 %v1169, %v1168
        %v1179 = vpack.c.b16 %v1171, %v1170
        %1188 = vmatprep.subr.bf16.mxu0 0
        %1189 = vmatpush1.bf16.msra.mxu0 %v1179
        %1190 = vmatprep.subr.bf16.mxu0 0
        %1191 = vmatpush1.bf16.msra.mxu0 %v1178
        %1192 = vmatprep.subr.bf16.mxu0 0
        %1193 = vmatpush1.bf16.msra.mxu0 %v1177
        %1194 = vmatprep.subr.bf16.mxu0 0
        %1195 = vmatpush1.bf16.msra.mxu0 %v1176
        %1196 = vmatprep.subr.bf16.mxu0 0
        %1197 = vmatpush1.bf16.msra.mxu0 %v1175
        %1198 = vmatprep.subr.bf16.mxu0 0
        %1199 = vmatpush1.bf16.msra.mxu0 %v1174
        %1200 = vmatprep.subr.bf16.mxu0 0
        %1201 = vmatpush1.bf16.msra.mxu0 %v1173
        %1202 = vmatprep.subr.bf16.mxu0 0
        %1203 = vmatpush1.bf16.msra.mxu0 %v1172
        %1204 = vmatprep.subr.bf16.mxu0 0
        %1205 = vmatpush2.bf16.msra.mxu0 0
        %1206 = vmatprep.subr.bf16.mxu0 0
        %1207 = vmatpush2.bf16.msra.mxu0 0
        %1208 = vmatprep.subr.bf16.mxu0 0
        %1209 = vmatpush2.bf16.msra.mxu0 0
        %1210 = vmatprep.subr.bf16.mxu0 0
        %1211 = vmatpush2.bf16.msra.mxu0 0
        %1212 = vmatprep.subr.bf16.mxu0 0
        %1213 = vmatpush2.bf16.msra.mxu0 0
        %1214 = vmatprep.subr.bf16.mxu0 0
        %1215 = vmatpush2.bf16.msra.mxu0 0
        %1216 = vmatprep.subr.bf16.mxu0 0
        %1217 = vmatpush2.bf16.msra.mxu0 0
        %1218 = vmatprep.subr.bf16.mxu0 0
        %1219 = vmatpush2.bf16.msra.mxu0 0
        %1220 = vmatprep.mubr.bf16.mxu0 0
        %1221 = vmatmul.mubr.bf16.gmra.mxu0 %v1118
        %v1222 = vpop.f32.mrf.mxu0
        %v1223 = vadd.f32 %v1139, %v1222
        %v1224 = vpop.f32.mrf.mxu0
        %v1225 = vpop.f32.mrf.mxu0
        %v1226 = vadd.f32 %v1139, %v1225
        %v1227 = vpop.f32.mrf.mxu0
        %1228 = vmatprep.mubr.bf16.mxu0 0
        %1229 = vmatmul.mubr.bf16.gmra.mxu0 %v1119
        %v1230 = vpop.f32.mrf.mxu0
        %v1231 = vadd.f32 %v1139, %v1230
        %v1232 = vpop.f32.mrf.mxu0
        %v1233 = vpop.f32.mrf.mxu0
        %v1234 = vadd.f32 %v1139, %v1233
        %v1235 = vpop.f32.mrf.mxu0
        %1236 = vdwg.mxu0
        %v1237 = vadd.f32 %v532, %v1223
        %v1238 = vadd.f32 %v533, %v1226
        %v1239 = vadd.f32 %v534, %v1231
        %v1240 = vadd.f32 %v535, %v1234
        %1241 = vadd.xlane.f32.xlu0 %v1237
        %v1242 = vpop.xlane.xlu0 %1241
        %1243 = vadd.xlane.f32.xlu0 %v1238
        %v1244 = vpop.xlane.xlu0 %1243
        %1245 = vadd.xlane.f32.xlu0 %v1239
        %v1246 = vpop.xlane.xlu0 %1245
        %1247 = vadd.xlane.f32.xlu0 %v1240
        %v1248 = vpop.xlane.xlu0 %1247
        %v1249 = vmul.f32 %v1242, %v550
        %v1250 = vmul.f32 %v1244, %v550
        %v1251 = vmul.f32 %v1246, %v550
        %v1252 = vmul.f32 %v1248, %v550
        %v1253 = vsub.f32 %v1237, %v1249
        %v1254 = vsub.f32 %v1238, %v1250
        %v1255 = vsub.f32 %v1239, %v1251
        %v1256 = vsub.f32 %v1240, %v1252
        %v1257 = vmul.f32 %v1253, %v1253
        %v1258 = vmul.f32 %v1254, %v1254
        %v1259 = vmul.f32 %v1255, %v1255
        %v1260 = vmul.f32 %v1256, %v1256
        %1261 = vadd.xlane.f32.xlu0 %v1257
        %v1262 = vpop.xlane.xlu0 %1261
        %1263 = vadd.xlane.f32.xlu0 %v1258
        %v1264 = vpop.xlane.xlu0 %1263
        %1265 = vadd.xlane.f32.xlu0 %v1259
        %v1266 = vpop.xlane.xlu0 %1265
        %1267 = vadd.xlane.f32.xlu0 %v1260
        %v1268 = vpop.xlane.xlu0 %1267
        %v1269 = vmul.f32 %v1262, %v550
        %v1270 = vmul.f32 %v1264, %v550
        %v1271 = vmul.f32 %v1266, %v550
        %v1272 = vmul.f32 %v1268, %v550
        %v1273 = vadd.f32 %v1269, 1e-05
        %v1274 = vadd.f32 %v1270, 1e-05
        %v1275 = vadd.f32 %v1271, 1e-05
        %v1276 = vadd.f32 %v1272, 1e-05
        %v1277 = vrsqrt.pop %v1273
        %v1278 = vrsqrt.pop %v1274
        %v1279 = vrsqrt.pop %v1275
        %v1280 = vrsqrt.pop %v1276
        %v1281 = vmul.f32 %v1253, %v1277
        %v1282 = vmul.f32 %v1254, %v1278
        %v1283 = vmul.f32 %v1255, %v1279
        %v1284 = vmul.f32 %v1256, %v1280
        %v1285 = vlaneseq
        %v1286 = vshrl.u32 %v1285, 7
        %v1287 = vsub.s32 0, %v1286
        %v1288 = vrot.slane %v538, %v1287
        %v1289 = vmul.f32 %v1281, %v1288
        %v1290 = vmul.f32 %v1282, %v1288
        %v1291 = vmul.f32 %v1283, %v1288
        %v1292 = vmul.f32 %v1284, %v1288
        %v1293 = vlaneseq
        %v1294 = vshrl.u32 %v1293, 7
        %v1295 = vsub.s32 0, %v1294
        %v1296 = vrot.slane %v539, %v1295
        %v1297 = vadd.f32 %v1289, %v1296
        %v1298 = vadd.f32 %v1290, %v1296
        %v1299 = vadd.f32 %v1291, %v1296
        %v1300 = vadd.f32 %v1292, %v1296
        %v1301 = vpack.c.bf16 %v1298, %v1297
        %v1302 = vpack.c.bf16 %v1300, %v1299
        %v1303 = vld [vmem:[%s441] sm:$0xff]
        %v1304 = vld [vmem:[%s441 + $0x8] sm:$0xff]
        %v1305 = vld [vmem:[%s441 + $0x10] sm:$0xff]
        %v1306 = vld [vmem:[%s441 + $0x18] sm:$0xff]
        %v1307 = vld [vmem:[%s441 + $0x20] sm:$0xff]
        %v1308 = vld [vmem:[%s441 + $0x28] sm:$0xff]
        %v1309 = vld [vmem:[%s441 + $0x30] sm:$0xff]
        %v1310 = vld [vmem:[%s441 + $0x38] sm:$0xff]
        %v1311 = vld [vmem:[%s441 + $0x40] sm:$0xff]
        %v1312 = vld [vmem:[%s441 + $0x48] sm:$0xff]
        %v1313 = vld [vmem:[%s441 + $0x50] sm:$0xff]
        %v1314 = vld [vmem:[%s441 + $0x58] sm:$0xff]
        %v1315 = vld [vmem:[%s441 + $0x60] sm:$0xff]
        %v1316 = vld [vmem:[%s441 + $0x68] sm:$0xff]
        %v1317 = vld [vmem:[%s441 + $0x70] sm:$0xff]
        %v1318 = vld [vmem:[%s441 + $0x78] sm:$0xff]
        %v1319 = vld [vmem:[%s518] sm:$0x3]
        %v1321 = vlaneseq
        %v1322 = vshrl.u32 %v1321, 7
        %v1323 = vsub.s32 0, %v1322
        %v1324 = vrot.slane %v1319, %v1323
        %v1325 = vlaneseq
        %v1326 = vshrl.u32 %v1325, 7
        %v1327 = vsub.s32 1, %v1326
        %v1328 = vrot.slane %v1319, %v1327
        %v1347 = vunpack.c.l.b16 %v1303
        %v1348 = vunpack.c.h.b16 %v1303
        %v1349 = vunpack.c.l.b16 %v1304
        %v1350 = vunpack.c.h.b16 %v1304
        %v1351 = vunpack.c.l.b16 %v1305
        %v1352 = vunpack.c.h.b16 %v1305
        %v1353 = vunpack.c.l.b16 %v1306
        %v1354 = vunpack.c.h.b16 %v1306
        %v1355 = vunpack.c.l.b16 %v1307
        %v1356 = vunpack.c.h.b16 %v1307
        %v1357 = vunpack.c.l.b16 %v1308
        %v1358 = vunpack.c.h.b16 %v1308
        %v1359 = vunpack.c.l.b16 %v1309
        %v1360 = vunpack.c.h.b16 %v1309
        %v1361 = vunpack.c.l.b16 %v1310
        %v1362 = vunpack.c.h.b16 %v1310
        %v1363 = vunpack.c.l.b16 %v1311
        %v1364 = vunpack.c.h.b16 %v1311
        %v1365 = vunpack.c.l.b16 %v1312
        %v1366 = vunpack.c.h.b16 %v1312
        %v1367 = vunpack.c.l.b16 %v1313
        %v1368 = vunpack.c.h.b16 %v1313
        %v1369 = vunpack.c.l.b16 %v1314
        %v1370 = vunpack.c.h.b16 %v1314
        %v1371 = vunpack.c.l.b16 %v1315
        %v1372 = vunpack.c.h.b16 %v1315
        %v1373 = vunpack.c.l.b16 %v1316
        %v1374 = vunpack.c.h.b16 %v1316
        %v1375 = vunpack.c.l.b16 %v1317
        %v1376 = vunpack.c.h.b16 %v1317
        %v1377 = vunpack.c.l.b16 %v1318
        %v1378 = vunpack.c.h.b16 %v1318
        %v1379 = vpack.c.b16 %v1349, %v1347
        %v1380 = vpack.c.b16 %v1350, %v1348
        %v1381 = vpack.c.b16 %v1353, %v1351
        %v1382 = vpack.c.b16 %v1354, %v1352
        %v1383 = vpack.c.b16 %v1357, %v1355
        %v1384 = vpack.c.b16 %v1358, %v1356
        %v1385 = vpack.c.b16 %v1361, %v1359
        %v1386 = vpack.c.b16 %v1362, %v1360
        %v1387 = vpack.c.b16 %v1365, %v1363
        %v1388 = vpack.c.b16 %v1366, %v1364
        %v1389 = vpack.c.b16 %v1369, %v1367
        %v1390 = vpack.c.b16 %v1370, %v1368
        %v1391 = vpack.c.b16 %v1373, %v1371
        %v1392 = vpack.c.b16 %v1374, %v1372
        %v1393 = vpack.c.b16 %v1377, %v1375
        %v1394 = vpack.c.b16 %v1378, %v1376
        %1411 = vmatprep.subr.bf16.mxu0 %v1394
        %1412 = vmatpush1.bf16.msra.mxu0 %v1393
        %1413 = vmatprep.subr.bf16.mxu0 %v1392
        %1414 = vmatpush1.bf16.msra.mxu0 %v1391
        %1415 = vmatprep.subr.bf16.mxu0 %v1390
        %1416 = vmatpush1.bf16.msra.mxu0 %v1389
        %1417 = vmatprep.subr.bf16.mxu0 %v1388
        %1418 = vmatpush1.bf16.msra.mxu0 %v1387
        %1419 = vmatprep.subr.bf16.mxu0 %v1386
        %1420 = vmatpush1.bf16.msra.mxu0 %v1385
        %1421 = vmatprep.subr.bf16.mxu0 %v1384
        %1422 = vmatpush1.bf16.msra.mxu0 %v1383
        %1423 = vmatprep.subr.bf16.mxu0 %v1382
        %1424 = vmatpush1.bf16.msra.mxu0 %v1381
        %1425 = vmatprep.subr.bf16.mxu0 %v1380
        %1426 = vmatpush1.bf16.msra.mxu0 %v1379
        %1427 = vmatprep.subr.bf16.mxu0 0
        %1428 = vmatpush2.bf16.msra.mxu0 0
        %1429 = vmatprep.subr.bf16.mxu0 0
        %1430 = vmatpush2.bf16.msra.mxu0 0
        %1431 = vmatprep.subr.bf16.mxu0 0
        %1432 = vmatpush2.bf16.msra.mxu0 0
        %1433 = vmatprep.subr.bf16.mxu0 0
        %1434 = vmatpush2.bf16.msra.mxu0 0
        %1435 = vmatprep.subr.bf16.mxu0 0
        %1436 = vmatpush2.bf16.msra.mxu0 0
        %1437 = vmatprep.subr.bf16.mxu0 0
        %1438 = vmatpush2.bf16.msra.mxu0 0
        %1439 = vmatprep.subr.bf16.mxu0 0
        %1440 = vmatpush2.bf16.msra.mxu0 0
        %1441 = vmatprep.subr.bf16.mxu0 0
        %1442 = vmatpush2.bf16.msra.mxu0 0
        %1443 = vmatprep.mubr.bf16.mxu0 0
        %1444 = vmatmul.mubr.bf16.gmra.mxu0 %v1301
        %v1445 = vpop.f32.mrf.mxu0
        %v1446 = vadd.f32 %v1324, %v1445
        %v1447 = vpop.f32.mrf.mxu0
        %v1448 = vadd.f32 %v1328, %v1447
        %v1449 = vpop.f32.mrf.mxu0
        %v1450 = vadd.f32 %v1324, %v1449
        %v1451 = vpop.f32.mrf.mxu0
        %v1452 = vadd.f32 %v1328, %v1451
        %1453 = vmatprep.mubr.bf16.mxu0 0
        %1454 = vmatmul.mubr.bf16.gmra.mxu0 %v1302
        %v1455 = vpop.f32.mrf.mxu0
        %v1456 = vadd.f32 %v1324, %v1455
        %v1457 = vpop.f32.mrf.mxu0
        %v1458 = vadd.f32 %v1328, %v1457
        %v1459 = vpop.f32.mrf.mxu0
        %v1460 = vadd.f32 %v1324, %v1459
        %v1461 = vpop.f32.mrf.mxu0
        %v1462 = vadd.f32 %v1328, %v1461
        %1463 = vdwg.mxu0
        %v1464 = vmul.f32 %v1446, 0.5
        %v1465 = vmul.f32 %v1448, 0.5
        %v1466 = vmul.f32 %v1450, 0.5
        %v1467 = vmul.f32 %v1452, 0.5
        %v1468 = vmul.f32 %v1456, 0.5
        %v1469 = vmul.f32 %v1458, 0.5
        %v1470 = vmul.f32 %v1460, 0.5
        %v1471 = vmul.f32 %v1462, 0.5
        %v1472 = vmul.f32 %v1446, 0.70710677
        %v1473 = vmul.f32 %v1448, 0.70710677
        %v1474 = vmul.f32 %v1450, 0.70710677
        %v1475 = vmul.f32 %v1452, 0.70710677
        %v1476 = vmul.f32 %v1456, 0.70710677
        %v1477 = vmul.f32 %v1458, 0.70710677
        %v1478 = vmul.f32 %v1460, 0.70710677
        %v1479 = vmul.f32 %v1462, 0.70710677
        %v1480 = verf.f32.pop %v1472
        %v1481 = verf.f32.pop %v1473
        %v1482 = verf.f32.pop %v1474
        %v1483 = verf.f32.pop %v1475
        %v1484 = verf.f32.pop %v1476
        %v1485 = verf.f32.pop %v1477
        %v1486 = verf.f32.pop %v1478
        %v1487 = verf.f32.pop %v1479
        %v1488 = vadd.f32 %v1480, 1.0
        %v1489 = vadd.f32 %v1481, 1.0
        %v1490 = vadd.f32 %v1482, 1.0
        %v1491 = vadd.f32 %v1483, 1.0
        %v1492 = vadd.f32 %v1484, 1.0
        %v1493 = vadd.f32 %v1485, 1.0
        %v1494 = vadd.f32 %v1486, 1.0
        %v1495 = vadd.f32 %v1487, 1.0
        %v1496 = vmul.f32 %v1464, %v1488
        %v1497 = vmul.f32 %v1465, %v1489
        %v1498 = vmul.f32 %v1466, %v1490
        %v1499 = vmul.f32 %v1467, %v1491
        %v1500 = vmul.f32 %v1468, %v1492
        %v1501 = vmul.f32 %v1469, %v1493
        %v1502 = vmul.f32 %v1470, %v1494
        %v1503 = vmul.f32 %v1471, %v1495
        %v1504 = vpack.c.bf16 %v1498, %v1496
        %v1505 = vpack.c.bf16 %v1499, %v1497
        %v1506 = vpack.c.bf16 %v1502, %v1500
        %v1507 = vpack.c.bf16 %v1503, %v1501
        %v1508 = vld [vmem:[%s450] sm:$0xf]
        %v1509 = vld [vmem:[%s450 + $0x4] sm:$0xf]
        %v1510 = vld [vmem:[%s450 + $0x8] sm:$0xf]
        %v1511 = vld [vmem:[%s450 + $0xc] sm:$0xf]
        %v1512 = vld [vmem:[%s450 + $0x10] sm:$0xf]
        %v1513 = vld [vmem:[%s450 + $0x14] sm:$0xf]
        %v1514 = vld [vmem:[%s450 + $0x18] sm:$0xf]
        %v1515 = vld [vmem:[%s450 + $0x1c] sm:$0xf]
        %v1516 = vld [vmem:[%s450 + $0x20] sm:$0xf]
        %v1517 = vld [vmem:[%s450 + $0x24] sm:$0xf]
        %v1518 = vld [vmem:[%s450 + $0x28] sm:$0xf]
        %v1519 = vld [vmem:[%s450 + $0x2c] sm:$0xf]
        %v1520 = vld [vmem:[%s450 + $0x30] sm:$0xf]
        %v1521 = vld [vmem:[%s450 + $0x34] sm:$0xf]
        %v1522 = vld [vmem:[%s450 + $0x38] sm:$0xf]
        %v1523 = vld [vmem:[%s450 + $0x3c] sm:$0xf]
        %v1524 = vld [vmem:[%s450 + $0x40] sm:$0xf]
        %v1525 = vld [vmem:[%s450 + $0x44] sm:$0xf]
        %v1526 = vld [vmem:[%s450 + $0x48] sm:$0xf]
        %v1527 = vld [vmem:[%s450 + $0x4c] sm:$0xf]
        %v1528 = vld [vmem:[%s450 + $0x50] sm:$0xf]
        %v1529 = vld [vmem:[%s450 + $0x54] sm:$0xf]
        %v1530 = vld [vmem:[%s450 + $0x58] sm:$0xf]
        %v1531 = vld [vmem:[%s450 + $0x5c] sm:$0xf]
        %v1532 = vld [vmem:[%s450 + $0x60] sm:$0xf]
        %v1533 = vld [vmem:[%s450 + $0x64] sm:$0xf]
        %v1534 = vld [vmem:[%s450 + $0x68] sm:$0xf]
        %v1535 = vld [vmem:[%s450 + $0x6c] sm:$0xf]
        %v1536 = vld [vmem:[%s450 + $0x70] sm:$0xf]
        %v1537 = vld [vmem:[%s450 + $0x74] sm:$0xf]
        %v1538 = vld [vmem:[%s450 + $0x78] sm:$0xf]
        %v1539 = vld [vmem:[%s450 + $0x7c] sm:$0xf]
        %v1540 = vlaneseq
        %v1541 = vshrl.u32 %v1540, 7
        %v1542 = vsub.s32 0, %v1541
        %v1543 = vrot.slane %v541, %v1542
        %v1576 = vunpack.c.l.b16 %v1508
        %v1577 = vunpack.c.l.b16 %v1509
        %v1578 = vunpack.c.l.b16 %v1510
        %v1579 = vunpack.c.l.b16 %v1511
        %v1580 = vunpack.c.l.b16 %v1512
        %v1581 = vunpack.c.l.b16 %v1513
        %v1582 = vunpack.c.l.b16 %v1514
        %v1583 = vunpack.c.l.b16 %v1515
        %v1584 = vunpack.c.l.b16 %v1516
        %v1585 = vunpack.c.l.b16 %v1517
        %v1586 = vunpack.c.l.b16 %v1518
        %v1587 = vunpack.c.l.b16 %v1519
        %v1588 = vunpack.c.l.b16 %v1520
        %v1589 = vunpack.c.l.b16 %v1521
        %v1590 = vunpack.c.l.b16 %v1522
        %v1591 = vunpack.c.l.b16 %v1523
        %v1592 = vunpack.c.l.b16 %v1524
        %v1593 = vunpack.c.l.b16 %v1525
        %v1594 = vunpack.c.l.b16 %v1526
        %v1595 = vunpack.c.l.b16 %v1527
        %v1596 = vunpack.c.l.b16 %v1528
        %v1597 = vunpack.c.l.b16 %v1529
        %v1598 = vunpack.c.l.b16 %v1530
        %v1599 = vunpack.c.l.b16 %v1531
        %v1600 = vunpack.c.l.b16 %v1532
        %v1601 = vunpack.c.l.b16 %v1533
        %v1602 = vunpack.c.l.b16 %v1534
        %v1603 = vunpack.c.l.b16 %v1535
        %v1604 = vunpack.c.l.b16 %v1536
        %v1605 = vunpack.c.l.b16 %v1537
        %v1606 = vunpack.c.l.b16 %v1538
        %v1607 = vunpack.c.l.b16 %v1539
        %v1608 = vpack.c.b16 %v1577, %v1576
        %v1609 = vpack.c.b16 %v1579, %v1578
        %v1610 = vpack.c.b16 %v1581, %v1580
        %v1611 = vpack.c.b16 %v1583, %v1582
        %v1612 = vpack.c.b16 %v1585, %v1584
        %v1613 = vpack.c.b16 %v1587, %v1586
        %v1614 = vpack.c.b16 %v1589, %v1588
        %v1615 = vpack.c.b16 %v1591, %v1590
        %v1616 = vpack.c.b16 %v1593, %v1592
        %v1617 = vpack.c.b16 %v1595, %v1594
        %v1618 = vpack.c.b16 %v1597, %v1596
        %v1619 = vpack.c.b16 %v1599, %v1598
        %v1620 = vpack.c.b16 %v1601, %v1600
        %v1621 = vpack.c.b16 %v1603, %v1602
        %v1622 = vpack.c.b16 %v1605, %v1604
        %v1623 = vpack.c.b16 %v1607, %v1606
        %1640 = vmatprep.subr.bf16.mxu0 0
        %1641 = vmatpush1.bf16.msra.mxu0 %v1615
        %1642 = vmatprep.subr.bf16.mxu0 0
        %1643 = vmatpush1.bf16.msra.mxu0 %v1614
        %1644 = vmatprep.subr.bf16.mxu0 0
        %1645 = vmatpush1.bf16.msra.mxu0 %v1613
        %1646 = vmatprep.subr.bf16.mxu0 0
        %1647 = vmatpush1.bf16.msra.mxu0 %v1612
        %1648 = vmatprep.subr.bf16.mxu0 0
        %1649 = vmatpush1.bf16.msra.mxu0 %v1611
        %1650 = vmatprep.subr.bf16.mxu0 0
        %1651 = vmatpush1.bf16.msra.mxu0 %v1610
        %1652 = vmatprep.subr.bf16.mxu0 0
        %1653 = vmatpush1.bf16.msra.mxu0 %v1609
        %1654 = vmatprep.subr.bf16.mxu0 0
        %1655 = vmatpush1.bf16.msra.mxu0 %v1608
        %1656 = vmatprep.subr.bf16.mxu0 0
        %1657 = vmatpush2.bf16.msra.mxu0 %v1623
        %1658 = vmatprep.subr.bf16.mxu0 0
        %1659 = vmatpush2.bf16.msra.mxu0 %v1622
        %1660 = vmatprep.subr.bf16.mxu0 0
        %1661 = vmatpush2.bf16.msra.mxu0 %v1621
        %1662 = vmatprep.subr.bf16.mxu0 0
        %1663 = vmatpush2.bf16.msra.mxu0 %v1620
        %1664 = vmatprep.subr.bf16.mxu0 0
        %1665 = vmatpush2.bf16.msra.mxu0 %v1619
        %1666 = vmatprep.subr.bf16.mxu0 0
        %1667 = vmatpush2.bf16.msra.mxu0 %v1618
        %1668 = vmatprep.subr.bf16.mxu0 0
        %1669 = vmatpush2.bf16.msra.mxu0 %v1617
        %1670 = vmatprep.subr.bf16.mxu0 0
        %1671 = vmatpush2.bf16.msra.mxu0 %v1616
        %1672 = vmatprep.mubr.bf16.mxu0 %v1505
        %1673 = vmatmul.mubr.bf16.gmra.mxu0 %v1504
        %v1674 = vpop.f32.mrf.mxu0
        %v1675 = vadd.f32 %v1543, %v1674
        %v1676 = vpop.f32.mrf.mxu0
        %v1677 = vpop.f32.mrf.mxu0
        %v1678 = vadd.f32 %v1543, %v1677
        %v1679 = vpop.f32.mrf.mxu0
        %1680 = vmatprep.mubr.bf16.mxu0 %v1507
        %1681 = vmatmul.mubr.bf16.gmra.mxu0 %v1506
        %v1682 = vpop.f32.mrf.mxu0
        %v1683 = vadd.f32 %v1543, %v1682
        %v1684 = vpop.f32.mrf.mxu0
        %v1685 = vpop.f32.mrf.mxu0
        %v1686 = vadd.f32 %v1543, %v1685
        %v1687 = vpop.f32.mrf.mxu0
        %1688 = vdwg.mxu0
        %v1689 = vadd.f32 %v1675, %v1237
        %v1690 = vadd.f32 %v1678, %v1238
        %v1691 = vadd.f32 %v1683, %v1239
        %v1692 = vadd.f32 %v1686, %v1240
        %1693 = vst [vmem:[#allocation2] sm:$0xff] %v1689
        %1694 = vst [vmem:[#allocation2 + $0x8] sm:$0xff] %v1690
        %1695 = vst [vmem:[#allocation2 + $0x10] sm:$0xff] %v1691
        %1696 = vst [vmem:[#allocation2 + $0x18] sm:$0xff] %v1692
        %p1697 = scmp.eq.s32.totalorder %s28, 1
        // Predicated region
        $region81: #{tpu_custom_call.1} parent=55 // pred_check
          %p1698 = pneg %p1697
        $region82: #{tpu_custom_call.1} parent=55 // pred_check_branch
          %1700 = sbr.rel (%p1698) target = $region84
        $region83: #{tpu_custom_call.1} parent=55 // pred_region
          %v1701 = vld [vmem:[%s8] sm:$0x1]
          %v1702 = vld [vmem:[%s8 + $0x1] sm:$0x1]
          %v1705 = vrot.slane %v1691, 7
          %vm1706 = vcmask 1041409
          %v1707 = vsel %vm1706, %v1705, %v1689
          %vm1709 = vcmask 1041408
          %v1710 = vsel %vm1709, %v1707, 0.0
          %1711 = vadd.xlane.f32.xlu0 %v1710
          %v1712 = vpop.xlane.xlu0 %1711
          %v1713 = vmul.f32 %v1712, %v550
          %v1715 = vrot.slane %v1713, 1
          %v1718 = vsub.f32 %v1689, %v1713
          %v1719 = vsub.f32 %v1691, %v1715
          %v1720 = vmul.f32 %v1718, %v1718
          %v1721 = vmul.f32 %v1719, %v1719
          %v1724 = vrot.slane %v1721, 7
          %v1725 = vsel %vm1706, %v1724, %v1720
          %v1727 = vsel %vm1709, %v1725, 0.0
          %1728 = vadd.xlane.f32.xlu0 %v1727
          %v1729 = vpop.xlane.xlu0 %1728
          %v1730 = vmul.f32 %v1729, %v550
          %v1731 = vadd.f32 %v1730, 1e-05
          %v1732 = vrsqrt.pop %v1731
          %v1734 = vrot.slane %v1732, 1
          %v1737 = vmul.f32 %v1718, %v1732
          %v1738 = vmul.f32 %v1719, %v1734
          %v1739 = vlaneseq
          %v1740 = vshrl.u32 %v1739, 7
          %v1741 = vsub.s32 0, %v1740
          %v1742 = vrot.slane %v1701, %v1741
          %v1743 = vmul.f32 %v1737, %v1742
          %v1744 = vmul.f32 %v1738, %v1742
          %v1745 = vlaneseq
          %v1746 = vshrl.u32 %v1745, 7
          %v1747 = vsub.s32 0, %v1746
          %v1748 = vrot.slane %v1702, %v1747
          %v1749 = vadd.f32 %v1743, %v1748
          %v1750 = vadd.f32 %v1744, %v1748
          %v1753 = vrot.slane %v1750, 7
          %v1754 = vsel %vm1706, %v1753, %v1749
          %1756 = vst [vmem:[#allocation12] sm:$0x3] %v1754
        $region84: #{tpu_custom_call.1} parent=55 // pred_fallthru
          _
        // Predicated region
        $region85: #{tpu_custom_call.1} parent=55 // pred_check
          %p1757 = pneg %p265
        $region86: #{tpu_custom_call.1} parent=55 // pred_check_branch
          %1759 = sbr.rel (%p1757) target = $region88
        $region87: #{tpu_custom_call.1} parent=55 // pred_region
          %s1761 = ssub.s32 32, 32
          %1762 = vsyncadd [#allocation5], %s1761
          %s1764 = sshll.u32 [#allocation12], 4
          %s1765 = int_to_ptr.vmem [resolvable:$true] %s1764
          %1767 = dma.vmem_to_hbm [thread:$0]  %s1765, 32, %s9, [#allocation5]
        $region88: #{tpu_custom_call.1} parent=55 // pred_fallthru
          _
        // Predicated region
        $region89: #{tpu_custom_call.1} parent=55 // pred_check
          %p1768 = pneg %p265
        $region90: #{tpu_custom_call.1} parent=55 // pred_check_branch
          %1770 = sbr.rel (%p1768) target = $region92
        $region91: #{tpu_custom_call.1} parent=55 // pred_region
          %1771 = dma.done [#allocation5], 32
        $region92: #{tpu_custom_call.1} parent=55 // pred_fallthru
          _
      $region56: #{tpu_custom_call.1} parent=5 // pred_fallthru
        _
      %p1772 = scmp.le.s32.totalorder 2, %s23
      // Predicated region
      $region93: #{tpu_custom_call.1} parent=5 // pred_check
        %p1773 = pneg %p1772
      $region94: #{tpu_custom_call.1} parent=5 // pred_check_branch
        %1775 = sbr.rel (%p1773) target = $region96
      $region95: #{tpu_custom_call.1} parent=5 // pred_region
        %s1776 = ssub.s32 %s23, 2
      $region96: #{tpu_custom_call.1} parent=5 // pred_fallthru
        _
    $region6: #{tpu_custom_call.1} parent=1 // loop_footer
      %s27 = sadd.s32 1, %s23
    $region7: #{tpu_custom_call.1} parent=1 // loop_footer_branch
      %22 = sbr.rel target = $region3
    $region8: #{tpu_custom_call.1} parent=1 // loop_exit
      _
    %1777 = vsyncpa [#allocation4], 1
    %s1778 = scalar_lea.sflag [#allocation4], 1
    %1779 = vsyncpa %s1778, 1
    %1780 = vsyncpa [#allocation7], 1
    %s1781 = scalar_lea.sflag [#allocation7], 1
    %1782 = vsyncpa %s1781, 1
    %1783 = vsyncpa [#allocation10], 1
    %s1784 = scalar_lea.sflag [#allocation10], 1
    %1785 = vsyncpa %s1784, 1
    %1786 = vsyncpa [#allocation5], 1
    %s1787 = scalar_lea.sflag [#allocation5], 1
    %1788 = vsyncpa %s1787, 1

</llo_original>
